<compile_context>
chip_gen: v5e
topology: v5e:2x2
jax: 0.10.0
libtpu: 0.0.40
codegen_flags: <defaults>
</compile_context>

<pallas_src>
import functools

import numpy as np
import jax
import jax.numpy as jnp
from jax import lax
from jax.experimental import pallas as pl
from jax.experimental.pallas import tpu as pltpu


# ----------------------------- Pallas kernel ------------------------------ #
def _make_fused_kernel(meta, op_dtype):
    """Build the fused (conv+BN+LeakyReLU)xL kernel body; one batch element per grid step.

    Ref layout (L = number of layers):
      inputs : x, R1, R2_hbm..RL_hbm, s1..sL
      outputs: o
      scratch: R2_vmem..RL_vmem, dma_sem, pad1..padL
    """
    L = len(meta)

    def kernel(*refs):
        x_ref = refs[0]                        # (1, H1, W1*C1) f32, VMEM (BlockSpec)
        r1_ref = refs[1]                       # (K1, N1) op_dtype, VMEM (BlockSpec)
        r_hbm = refs[2:L + 1]                  # R tables for layers 2..L, raw HBM refs
        s_refs = refs[L + 1:2 * L + 1]         # per-layer (1, Wo*Cout) f32 shift rows
        o_ref = refs[2 * L + 1]                # (1, Ho_L, Wo_L*Cout_L) f32
        sc = refs[2 * L + 2:]
        r_vmem = sc[:L - 1]                    # VMEM landing buffers for R2..RL
        dma_sem = sc[L - 1]                    # DMA semaphores, one per prefetched table
        pads = sc[L:]                          # per-layer zero-padded activation scratch (f32)

        first = pl.program_id(0) == 0

        @pl.when(first)
        def _prefetch_and_init():
            # Kick off all later-layer weight-table DMAs; they overlap layer-1..(l-1)
            # compute.  Also zero the halo rows of the pad scratches once (interior
            # rows are overwritten every grid step, halo rows are never touched again).
            for l in range(L - 1):
                pltpu.make_async_copy(r_hbm[l], r_vmem[l], dma_sem.at[l]).start()
            for p in pads:
                p[...] = jnp.zeros_like(p)

        def layer(act, pad_scr, r_val, s_val, m):
            # Write activation into the zero-padded scratch (zero rows = H padding).
            pad_scr[pl.ds(m["ph"], m["H"]), :] = act
            # H-tap gather as strided sublane reads (rides the vld slots, no MXU),
            # concatenated along lanes -> one big-K operand (Ho, kh*W*Cin).
            taps = []
            for i in range(m["kh"]):
                if m["sh"] == 1:
                    taps.append(pad_scr[pl.ds(i, m["Ho"]), :])
                else:
                    taps.append(pad_scr[pl.ds(i, m["Ho"], stride=m["sh"]), :])
            xg = jnp.concatenate(taps, axis=-1).astype(op_dtype)
            # One MXU matmul per layer: W-taps + channel mixing + BN scale all folded in R.
            y = jnp.dot(xg, r_val, preferred_element_type=jnp.float32)
            y = y + s_val                                   # folded conv bias + BN shift (f32)
            return jnp.where(y >= 0.0, y, 0.2 * y)          # LeakyReLU(0.2), f32 epilogue

        act = layer(x_ref[0], pads[0], r1_ref[...], s_refs[0][...], meta[0])
        for l in range(1, L):
            @pl.when(first)
            def _wait(_l=l):
                pltpu.make_async_copy(r_hbm[_l - 1], r_vmem[_l - 1],
                                      dma_sem.at[_l - 1]).wait()
            act = layer(act, pads[l], r_vmem[l - 1][...], s_refs[l][...], meta[l])

        o_ref[0] = act.astype(o_ref.dtype)                  # lane-dense (Ho_L, Wo_L*Cout_L)

    return kernel


def _fused_net_pallas(x3d, Rs, shifts, meta):
    """Single pallas_call running all layers.  x3d: (N, H, W*C) f32."""
    L = len(meta)
    N, H1, WC1 = x3d.shape
    Ho_f = meta[-1]["Ho"]
    out_cols = Rs[-1].shape[1]
    op_dtype = Rs[0].dtype

    inputs = [x3d, Rs[0]] + list(Rs[1:]) + list(shifts)

    in_specs = [pl.BlockSpec((1, H1, WC1), lambda b: (b, 0, 0)),
                pl.BlockSpec(Rs[0].shape, lambda b: (0, 0))]
    in_specs += [pl.BlockSpec(memory_space=pl.ANY) for _ in Rs[1:]]   # manual prefetch
    in_specs += [pl.BlockSpec(s.shape, lambda b: (0, 0)) for s in shifts]

    out_shape = jax.ShapeDtypeStruct((N, Ho_f, out_cols), jnp.float32)
    out_specs = pl.BlockSpec((1, Ho_f, out_cols), lambda b: (b, 0, 0))

    scratch_shapes = [pltpu.VMEM(r.shape, op_dtype) for r in Rs[1:]]
    scratch_shapes += [pltpu.SemaphoreType.DMA((L - 1,))]
    scratch_shapes += [pltpu.VMEM((m["H"] + 2 * m["ph"], m["WC"]), jnp.float32)
                       for m in meta]

    def _nbytes(a):
        return int(a.size) * int(jnp.dtype(a.dtype).itemsize)

    # Explicit VMEM budget sized from the layer tables (+ generous headroom).
    bs_bytes = (H1 * WC1 * 4 + _nbytes(Rs[0]) + sum(_nbytes(s) for s in shifts)
                + Ho_f * out_cols * 4)
    scratch_bytes = (sum(_nbytes(r) for r in Rs[1:])
                     + sum((m["H"] + 2 * m["ph"]) * m["WC"] * 4 for m in meta))
    vmem_limit = int(2 * bs_bytes + scratch_bytes) + (4 << 20)

    flops = 2 * N * sum(m["Ho"] * r.shape[0] * r.shape[1] for m, r in zip(meta, Rs))
    bytes_accessed = (_nbytes(x3d) + sum(_nbytes(r) for r in Rs)
                      + sum(_nbytes(s) for s in shifts) + N * Ho_f * out_cols * 4)
    cost = pl.CostEstimate(flops=int(flops), transcendentals=0,
                           bytes_accessed=int(bytes_accessed))

    return pl.pallas_call(
        _make_fused_kernel(meta, op_dtype),
        out_shape=out_shape,
        grid=(N,),
        in_specs=in_specs,
        out_specs=out_specs,
        scratch_shapes=scratch_shapes,
        compiler_params=pltpu.CompilerParams(
            dimension_semantics=("arbitrary",),     # sequential grid -> program_id==0 prefetch gate is safe
            vmem_limit_bytes=vmem_limit),
        cost_estimate=cost,
    )(*inputs)


# ------------------------- setup-time constant folding --------------------- #
def _build_layer_constants(cfg, layer_params, H, W, op_dtype):
    """Fold one Conv+BN layer into (R, shift_row, meta)."""
    w, b, gamma, beta, rmean, rvar = layer_params
    Cout, Cin, kh, kw = w.shape
    sh, sw = cfg["s"]
    ph, pw = cfg["p"]
    Ho = (H + 2 * ph - kh) // sh + 1
    Wo = (W + 2 * pw - kw) // sw + 1

    # W-tap 0/1 selectors: (kw, Wo, W).  Out-of-range taps stay zero => zero padding in W.
    B = np.zeros((kw, Wo, W), np.float32)
    for j in range(kw):
        for wo in range(Wo):
            wsrc = sw * wo + j - pw
            if 0 <= wsrc < W:
                B[j, wo, wsrc] = 1.0

    eps = 1e-5
    scale = gamma / jnp.sqrt(rvar + eps)              # BN scale, folded into R
    shift = beta + (b - rmean) * scale                # conv bias + BN shift

    # R[(i,w,ci), (wo,co)] = sum_j B[j,wo,w] * w[co,ci,i,j] * scale[co]
    w_scaled = w * scale[:, None, None, None]                         # (Cout,Cin,kh,kw)
    R = jnp.einsum("jow,dcij->iwcod", jnp.asarray(B), w_scaled)       # (kh,W,Cin,Wo,Cout)
    R = R.reshape(kh * W * Cin, Wo * Cout).astype(op_dtype)
    shift_row = jnp.tile(shift, (Wo,)).reshape(1, Wo * Cout).astype(jnp.float32)

    m = dict(H=H, WC=W * Cin, ph=ph, sh=sh, kh=kh, Ho=Ho)
    return R, shift_row, m, Ho, Wo


def prepare_fused(cfgs, params, H, W, operand_dtype=jnp.bfloat16):
    """Run once at setup: fold all layers into the kernel's constant operands (bf16 default)."""
    Rs, shifts, meta = [], [], []
    h, w_sp = H, W
    for cfg, p in zip(cfgs, params):
        R, s, m, Ho, Wo = _build_layer_constants(cfg, p, h, w_sp, operand_dtype)
        Rs.append(R)
        shifts.append(s)
        meta.append(m)
        h, w_sp = Ho, Wo
    cout_final = params[-1][0].shape[0]
    return tuple(Rs), tuple(shifts), tuple(meta), (h, w_sp, cout_final)


# --------------------------------- forward --------------------------------- #
def two_layer_scale2_forward(x_nchw, Rs, shifts, *, meta, out_dims):
    """NCHW in / NCHW out; single layout conversion at each module boundary."""
    N, C, H, W = x_nchw.shape
    Ho, Wo, Cout = out_dims
    x3d = jnp.transpose(x_nchw, (0, 2, 3, 1)).reshape(N, H, W * C)
    out = _fused_net_pallas(x3d, Rs, shifts, meta)          # (N, Ho, Wo*Cout)
    return out.reshape(N, Ho, Wo, Cout).transpose(0, 3, 1, 2)


# --------------------------- module definition ----------------------------- #
def make_layer_configs(backbone_depth, feature):
    f = feature
    cfgs = []
    cfgs.append(dict(cin=backbone_depth, cout=2 * f, k=(4, 4), s=(2, 2), p=(1, 1)))  # conv_dv_2
    f *= 2
    cfgs.append(dict(cin=f, cout=2 * f, k=(4, 1), s=(2, 1), p=(1, 0)))               # conv_keep_W
    f *= 2
    cfgs.append(dict(cin=f, cout=2 * f, k=(4, 4), s=(2, 2), p=(1, 1)))               # conv_dv_2
    f *= 2
    cfgs.append(dict(cin=f, cout=2 * f, k=(4, 1), s=(1, 1), p=(0, 0)))               # conv_keep_W(k=(4,1),s=(1,1),p=(0,0))
    return cfgs


def init_params(key, cfgs):
    params = []
    for cfg in cfgs:
        key, kw_, kb_, kg_, kbe_ = jax.random.split(key, 5)
        cin, cout = cfg["cin"], cfg["cout"]
        kh, kw = cfg["k"]
        w = 0.05 * jax.random.normal(kw_, (cout, cin, kh, kw), jnp.float32)
        b = 0.05 * jax.random.normal(kb_, (cout,), jnp.float32)
        gamma = 1.0 + 0.05 * jax.random.normal(kg_, (cout,), jnp.float32)
        beta = 0.05 * jax.random.normal(kbe_, (cout,), jnp.float32)
        rmean = jnp.zeros((cout,), jnp.float32)
        rvar = jnp.ones((cout,), jnp.float32)
        params.append((w, b, gamma, beta, rmean, rvar))
    return params


# Pure-JAX reference (lax.conv) for sanity checking the Pallas path.
def _reference_forward(x, params, cfgs):
    out = x
    for cfg, (w, b, gamma, beta, rmean, rvar) in zip(cfgs, params):
        z = lax.conv_general_dilated(
            out, w, window_strides=cfg["s"],
            padding=[(cfg["p"][0], cfg["p"][0]), (cfg["p"][1], cfg["p"][1])],
            dimension_numbers=("NCHW", "OIHW", "NCHW"))
        z = z + b[None, :, None, None]
        scale = gamma / jnp.sqrt(rvar + 1e-5)
        z = (z - rmean[None, :, None, None]) * scale[None, :, None, None] + beta[None, :, None, None]
        out = jnp.where(z >= 0.0, z, 0.2 * z)
    return out


if __name__ == "__main__":
    backbone_depth = 4
    feature = 4
    N, H, W = 2, 32, 16                       # NCHW input (2, 4, 32, 16)

    key = jax.random.PRNGKey(0)
    key, kx = jax.random.split(key)
    x = jax.random.normal(kx, (N, backbone_depth, H, W), jnp.float32)

    cfgs = make_layer_configs(backbone_depth, feature)
    params = init_params(key, cfgs)
    ref = _reference_forward(x, params, cfgs)

    # 1) f32-operand path: validates the fold / strided-gather / merged-K math tightly.
    Rs32, sh32, meta, out_dims = prepare_fused(cfgs, params, H, W,
                                               operand_dtype=jnp.float32)
    fwd32 = jax.jit(functools.partial(two_layer_scale2_forward,
                                      meta=meta, out_dims=out_dims))
    out32 = fwd32(x, Rs32, sh32)
    jax.block_until_ready(out32)
    assert out32.shape == (N, 16 * feature, 1, 4), out32.shape   # depth = feature*16 = 64
    err32 = float(jnp.max(jnp.abs(out32 - ref)))
    assert err32 < 1e-3, f"f32 path max err {err32}"

    # 2) bf16-operand path (the default): bf16 MXU operands, f32 accumulate + epilogue.
    #    Looser tolerance vs the f32 reference because weights/activations are rounded
    #    to bf16 at each layer.
    Rs16, sh16, meta16, out_dims16 = prepare_fused(cfgs, params, H, W)
    fwd16 = jax.jit(functools.partial(two_layer_scale2_forward,
                                      meta=meta16, out_dims=out_dims16))
    out16 = fwd16(x, Rs16, sh16)
    jax.block_until_ready(out16)
    assert out16.shape == (N, 16 * feature, 1, 4), out16.shape
    err16 = float(jnp.max(jnp.abs(out16 - ref)))
    assert err16 < 2e-2, f"bf16 path max err {err16}"

    print("KERNEL_OK")
</pallas_src>

<mosaic_0001>
module attributes {stable_mosaic.version = 11 : i64} {
  func.func @kernel(%arg0: i32, %arg1: memref<1x32x64xf32, #tpu.memory_space<vmem>>, %arg2: memref<256x64xf32, #tpu.memory_space<vmem>>, %arg3: memref<256x128xf32, #tpu.memory_space<any>>, %arg4: memref<512x128xf32, #tpu.memory_space<any>>, %arg5: memref<512x256xf32, #tpu.memory_space<any>>, %arg6: memref<1x64xf32, #tpu.memory_space<vmem>>, %arg7: memref<1x128xf32, #tpu.memory_space<vmem>>, %arg8: memref<1x128xf32, #tpu.memory_space<vmem>>, %arg9: memref<1x256xf32, #tpu.memory_space<vmem>>, %arg10: memref<1x1x256xf32, #tpu.memory_space<vmem>>, %arg11: memref<256x128xf32, #tpu.memory_space<vmem>>, %arg12: memref<512x128xf32, #tpu.memory_space<vmem>>, %arg13: memref<512x256xf32, #tpu.memory_space<vmem>>, %arg14: memref<3x!tpu.dma_semaphore, #tpu.memory_space<semaphore_mem>>, %arg15: memref<34x64xf32, #tpu.memory_space<vmem>>, %arg16: memref<18x64xf32, #tpu.memory_space<vmem>>, %arg17: memref<10x128xf32, #tpu.memory_space<vmem>>, %arg18: memref<4x128xf32, #tpu.memory_space<vmem>>) attributes {dimension_semantics = [#tpu.dimension_semantics<arbitrary>], iteration_bounds = array<i64: 2>, scalar_prefetch = 0 : i64, scratch_operands = 8 : i64, tpu.core_type = #tpu.core_type<tc>, window_params = [{transform_indices = @transform_0, window_bounds = array<i64: 1, 32, 64>}, {pipeline_mode = #tpu.pipeline_mode<synchronous>, transform_indices = @transform_1, window_bounds = array<i64: 256, 64>}, {}, {}, {}, {pipeline_mode = #tpu.pipeline_mode<synchronous>, transform_indices = @transform_5, window_bounds = array<i64: 1, 64>}, {pipeline_mode = #tpu.pipeline_mode<synchronous>, transform_indices = @transform_6, window_bounds = array<i64: 1, 128>}, {pipeline_mode = #tpu.pipeline_mode<synchronous>, transform_indices = @transform_7, window_bounds = array<i64: 1, 128>}, {pipeline_mode = #tpu.pipeline_mode<synchronous>, transform_indices = @transform_8, window_bounds = array<i64: 1, 256>}, {transform_indices = @transform_9, window_bounds = array<i64: 1, 1, 256>}]} {
    %c0_i32 = arith.constant 0 : i32
    %0 = arith.cmpi eq, %arg0, %c0_i32 : i32
    %1 = arith.extui %0 : i1 to i32
    %c0_i32_0 = arith.constant 0 : i32
    %2 = arith.cmpi ne, %1, %c0_i32_0 : i32
    scf.if %2 {
      %c0_i32_73 = arith.constant 0 : i32
      %77 = tpu.memref_slice %arg14[%c0_i32_73] : memref<3x!tpu.dma_semaphore, #tpu.memory_space<semaphore_mem>> -> memref<1x!tpu.dma_semaphore, #tpu.memory_space<semaphore_mem>>
      %78 = tpu.memref_squeeze %77 : memref<1x!tpu.dma_semaphore, #tpu.memory_space<semaphore_mem>> -> memref<!tpu.dma_semaphore, #tpu.memory_space<semaphore_mem>>
      tpu.enqueue_dma source(%arg3 : memref<256x128xf32, #tpu.memory_space<any>>) target(%arg11 : memref<256x128xf32, #tpu.memory_space<vmem>>) target_semaphore(%78 : memref<!tpu.dma_semaphore, #tpu.memory_space<semaphore_mem>>)
      %c1_i32 = arith.constant 1 : i32
      %79 = tpu.memref_slice %arg14[%c1_i32] : memref<3x!tpu.dma_semaphore, #tpu.memory_space<semaphore_mem>> -> memref<1x!tpu.dma_semaphore, #tpu.memory_space<semaphore_mem>>
      %80 = tpu.memref_squeeze %79 : memref<1x!tpu.dma_semaphore, #tpu.memory_space<semaphore_mem>> -> memref<!tpu.dma_semaphore, #tpu.memory_space<semaphore_mem>>
      tpu.enqueue_dma source(%arg4 : memref<512x128xf32, #tpu.memory_space<any>>) target(%arg12 : memref<512x128xf32, #tpu.memory_space<vmem>>) target_semaphore(%80 : memref<!tpu.dma_semaphore, #tpu.memory_space<semaphore_mem>>)
      %c2_i32 = arith.constant 2 : i32
      %81 = tpu.memref_slice %arg14[%c2_i32] : memref<3x!tpu.dma_semaphore, #tpu.memory_space<semaphore_mem>> -> memref<1x!tpu.dma_semaphore, #tpu.memory_space<semaphore_mem>>
      %82 = tpu.memref_squeeze %81 : memref<1x!tpu.dma_semaphore, #tpu.memory_space<semaphore_mem>> -> memref<!tpu.dma_semaphore, #tpu.memory_space<semaphore_mem>>
      tpu.enqueue_dma source(%arg5 : memref<512x256xf32, #tpu.memory_space<any>>) target(%arg13 : memref<512x256xf32, #tpu.memory_space<vmem>>) target_semaphore(%82 : memref<!tpu.dma_semaphore, #tpu.memory_space<semaphore_mem>>)
      %cst_74 = arith.constant 0.000000e+00 : f32
      %83 = vector.broadcast %cst_74 : f32 to vector<34x64xf32>
      %c0_75 = arith.constant 0 : index
      %c0_76 = arith.constant 0 : index
      %84 = vector.load %arg15[%c0_75, %c0_76] : memref<34x64xf32, #tpu.memory_space<vmem>>, vector<34x64xf32>
      tpu.vector_store %arg15[%c0_75, %c0_76], %83 {strides = array<i32>} : memref<34x64xf32, #tpu.memory_space<vmem>>, vector<34x64xf32>,
      %cst_77 = arith.constant 0.000000e+00 : f32
      %85 = vector.broadcast %cst_77 : f32 to vector<18x64xf32>
      %c0_78 = arith.constant 0 : index
      %c0_79 = arith.constant 0 : index
      %86 = vector.load %arg16[%c0_78, %c0_79] : memref<18x64xf32, #tpu.memory_space<vmem>>, vector<18x64xf32>
      tpu.vector_store %arg16[%c0_78, %c0_79], %85 {strides = array<i32>} : memref<18x64xf32, #tpu.memory_space<vmem>>, vector<18x64xf32>,
      %cst_80 = arith.constant 0.000000e+00 : f32
      %87 = vector.broadcast %cst_80 : f32 to vector<10x128xf32>
      %c0_81 = arith.constant 0 : index
      %c0_82 = arith.constant 0 : index
      %88 = vector.load %arg17[%c0_81, %c0_82] : memref<10x128xf32, #tpu.memory_space<vmem>>, vector<10x128xf32>
      tpu.vector_store %arg17[%c0_81, %c0_82], %87 {strides = array<i32>} : memref<10x128xf32, #tpu.memory_space<vmem>>, vector<10x128xf32>,
      %cst_83 = arith.constant 0.000000e+00 : f32
      %89 = vector.broadcast %cst_83 : f32 to vector<4x128xf32>
      %c0_84 = arith.constant 0 : index
      %c0_85 = arith.constant 0 : index
      %90 = vector.load %arg18[%c0_84, %c0_85] : memref<4x128xf32, #tpu.memory_space<vmem>>, vector<4x128xf32>
      tpu.vector_store %arg18[%c0_84, %c0_85], %89 {strides = array<i32>} : memref<4x128xf32, #tpu.memory_space<vmem>>, vector<4x128xf32>,
    } else {
    }
    %c0 = arith.constant 0 : index
    %c0_1 = arith.constant 0 : index
    %c0_2 = arith.constant 0 : index
    %3 = vector.load %arg1[%c0, %c0_1, %c0_2] : memref<1x32x64xf32, #tpu.memory_space<vmem>>, vector<1x32x64xf32>
    %4 = vector.shape_cast %3 : vector<1x32x64xf32> to vector<32x64xf32>
    %c0_3 = arith.constant 0 : index
    %c0_4 = arith.constant 0 : index
    %5 = vector.load %arg2[%c0_3, %c0_4] : memref<256x64xf32, #tpu.memory_space<vmem>>, vector<256x64xf32>
    %c0_5 = arith.constant 0 : index
    %c0_6 = arith.constant 0 : index
    %6 = vector.load %arg6[%c0_5, %c0_6] : memref<1x64xf32, #tpu.memory_space<vmem>>, vector<1x64xf32>
    %c1 = arith.constant 1 : index
    %c0_7 = arith.constant 0 : index
    %7 = vector.load %arg15[%c1, %c0_7] : memref<34x64xf32, #tpu.memory_space<vmem>>, vector<32x64xf32>
    tpu.vector_store %arg15[%c1, %c0_7], %4 {strides = array<i32>} : memref<34x64xf32, #tpu.memory_space<vmem>>, vector<32x64xf32>,
    %c0_8 = arith.constant 0 : index
    %c0_9 = arith.constant 0 : index
    %8 = tpu.strided_load %arg15[%c0_8, %c0_9] {strides = array<i32: 2, 1>} : memref<34x64xf32, #tpu.memory_space<vmem>>, vector<16x64xf32>
    %c1_10 = arith.constant 1 : index
    %c0_11 = arith.constant 0 : index
    %9 = tpu.strided_load %arg15[%c1_10, %c0_11] {strides = array<i32: 2, 1>} : memref<34x64xf32, #tpu.memory_space<vmem>>, vector<16x64xf32>
    %c2 = arith.constant 2 : index
    %c0_12 = arith.constant 0 : index
    %10 = tpu.strided_load %arg15[%c2, %c0_12] {strides = array<i32: 2, 1>} : memref<34x64xf32, #tpu.memory_space<vmem>>, vector<16x64xf32>
    %c3 = arith.constant 3 : index
    %c0_13 = arith.constant 0 : index
    %11 = tpu.strided_load %arg15[%c3, %c0_13] {strides = array<i32: 2, 1>} : memref<34x64xf32, #tpu.memory_space<vmem>>, vector<16x64xf32>
    %12 = tpu.concatenate %8, %9, %10, %11 in 1 : vector<16x64xf32>, vector<16x64xf32>, vector<16x64xf32>, vector<16x64xf32> -> vector<16x256xf32>
    %cst = arith.constant dense<0.000000e+00> : vector<16x64xf32>
    %13 = tpu.matmul %12, %5, %cst {dimension_numbers = #tpu.dot_dimension_numbers<[1], [0], [0], [1], [0, 0, 1, 1], [], []>} : vector<16x256xf32>, vector<256x64xf32>, vector<16x64xf32> -> vector<16x64xf32>
    %14 = vector.broadcast %6 : vector<1x64xf32> to vector<16x64xf32>
    %15 = arith.addf %13, %14 : vector<16x64xf32>
    %cst_14 = arith.constant 0.000000e+00 : f32
    %16 = vector.broadcast %cst_14 : f32 to vector<16x64xf32>
    %17 = arith.cmpf oge, %15, %16 : vector<16x64xf32>
    %cst_15 = arith.constant 2.000000e-01 : f32
    %18 = vector.broadcast %cst_15 : f32 to vector<16x64xf32>
    %19 = arith.mulf %18, %15 : vector<16x64xf32>
    %20 = arith.select %17, %15, %19 : vector<16x64xi1>, vector<16x64xf32>
    %21 = arith.extui %0 : i1 to i32
    %c0_i32_16 = arith.constant 0 : i32
    %22 = arith.cmpi ne, %21, %c0_i32_16 : i32
    scf.if %22 {
      %c0_i32_73 = arith.constant 0 : i32
      %77 = tpu.memref_slice %arg14[%c0_i32_73] : memref<3x!tpu.dma_semaphore, #tpu.memory_space<semaphore_mem>> -> memref<1x!tpu.dma_semaphore, #tpu.memory_space<semaphore_mem>>
      %78 = tpu.memref_squeeze %77 : memref<1x!tpu.dma_semaphore, #tpu.memory_space<semaphore_mem>> -> memref<!tpu.dma_semaphore, #tpu.memory_space<semaphore_mem>>
      tpu.wait_dma2 semaphore(%78 : memref<!tpu.dma_semaphore, #tpu.memory_space<semaphore_mem>>) src(%arg3 : memref<256x128xf32, #tpu.memory_space<any>>) dst(%arg11 : memref<256x128xf32, #tpu.memory_space<vmem>>)
    } else {
    }
    %c0_17 = arith.constant 0 : index
    %c0_18 = arith.constant 0 : index
    %23 = vector.load %arg11[%c0_17, %c0_18] : memref<256x128xf32, #tpu.memory_space<vmem>>, vector<256x128xf32>
    %c0_19 = arith.constant 0 : index
    %c0_20 = arith.constant 0 : index
    %24 = vector.load %arg7[%c0_19, %c0_20] : memref<1x128xf32, #tpu.memory_space<vmem>>, vector<1x128xf32>
    %c1_21 = arith.constant 1 : index
    %c0_22 = arith.constant 0 : index
    %25 = vector.load %arg16[%c1_21, %c0_22] : memref<18x64xf32, #tpu.memory_space<vmem>>, vector<16x64xf32>
    tpu.vector_store %arg16[%c1_21, %c0_22], %20 {strides = array<i32>} : memref<18x64xf32, #tpu.memory_space<vmem>>, vector<16x64xf32>,
    %c0_23 = arith.constant 0 : index
    %c0_24 = arith.constant 0 : index
    %26 = tpu.strided_load %arg16[%c0_23, %c0_24] {strides = array<i32: 2, 1>} : memref<18x64xf32, #tpu.memory_space<vmem>>, vector<8x64xf32>
    %c1_25 = arith.constant 1 : index
    %c0_26 = arith.constant 0 : index
    %27 = tpu.strided_load %arg16[%c1_25, %c0_26] {strides = array<i32: 2, 1>} : memref<18x64xf32, #tpu.memory_space<vmem>>, vector<8x64xf32>
    %c2_27 = arith.constant 2 : index
    %c0_28 = arith.constant 0 : index
    %28 = tpu.strided_load %arg16[%c2_27, %c0_28] {strides = array<i32: 2, 1>} : memref<18x64xf32, #tpu.memory_space<vmem>>, vector<8x64xf32>
    %c3_29 = arith.constant 3 : index
    %c0_30 = arith.constant 0 : index
    %29 = tpu.strided_load %arg16[%c3_29, %c0_30] {strides = array<i32: 2, 1>} : memref<18x64xf32, #tpu.memory_space<vmem>>, vector<8x64xf32>
    %30 = tpu.concatenate %26, %27, %28, %29 in 1 : vector<8x64xf32>, vector<8x64xf32>, vector<8x64xf32>, vector<8x64xf32> -> vector<8x256xf32>
    %cst_31 = arith.constant dense<0.000000e+00> : vector<8x128xf32>
    %31 = tpu.matmul %30, %23, %cst_31 {dimension_numbers = #tpu.dot_dimension_numbers<[1], [0], [0], [1], [0, 0, 1, 1], [], []>} : vector<8x256xf32>, vector<256x128xf32>, vector<8x128xf32> -> vector<8x128xf32>
    %32 = vector.broadcast %24 : vector<1x128xf32> to vector<8x128xf32>
    %33 = arith.addf %31, %32 : vector<8x128xf32>
    %cst_32 = arith.constant 0.000000e+00 : f32
    %34 = vector.broadcast %cst_32 : f32 to vector<8x128xf32>
    %35 = arith.cmpf oge, %33, %34 : vector<8x128xf32>
    %cst_33 = arith.constant 2.000000e-01 : f32
    %36 = vector.broadcast %cst_33 : f32 to vector<8x128xf32>
    %37 = arith.mulf %36, %33 : vector<8x128xf32>
    %38 = arith.select %35, %33, %37 : vector<8x128xi1>, vector<8x128xf32>
    %39 = arith.extui %0 : i1 to i32
    %c0_i32_34 = arith.constant 0 : i32
    %40 = arith.cmpi ne, %39, %c0_i32_34 : i32
    scf.if %40 {
      %c1_i32 = arith.constant 1 : i32
      %77 = tpu.memref_slice %arg14[%c1_i32] : memref<3x!tpu.dma_semaphore, #tpu.memory_space<semaphore_mem>> -> memref<1x!tpu.dma_semaphore, #tpu.memory_space<semaphore_mem>>
      %78 = tpu.memref_squeeze %77 : memref<1x!tpu.dma_semaphore, #tpu.memory_space<semaphore_mem>> -> memref<!tpu.dma_semaphore, #tpu.memory_space<semaphore_mem>>
      tpu.wait_dma2 semaphore(%78 : memref<!tpu.dma_semaphore, #tpu.memory_space<semaphore_mem>>) src(%arg4 : memref<512x128xf32, #tpu.memory_space<any>>) dst(%arg12 : memref<512x128xf32, #tpu.memory_space<vmem>>)
    } else {
    }
    %c0_35 = arith.constant 0 : index
    %c0_36 = arith.constant 0 : index
    %41 = vector.load %arg12[%c0_35, %c0_36] : memref<512x128xf32, #tpu.memory_space<vmem>>, vector<512x128xf32>
    %c0_37 = arith.constant 0 : index
    %c0_38 = arith.constant 0 : index
    %42 = vector.load %arg8[%c0_37, %c0_38] : memref<1x128xf32, #tpu.memory_space<vmem>>, vector<1x128xf32>
    %c1_39 = arith.constant 1 : index
    %c0_40 = arith.constant 0 : index
    %43 = vector.load %arg17[%c1_39, %c0_40] : memref<10x128xf32, #tpu.memory_space<vmem>>, vector<8x128xf32>
    tpu.vector_store %arg17[%c1_39, %c0_40], %38 {strides = array<i32>} : memref<10x128xf32, #tpu.memory_space<vmem>>, vector<8x128xf32>,
    %c0_41 = arith.constant 0 : index
    %c0_42 = arith.constant 0 : index
    %44 = tpu.strided_load %arg17[%c0_41, %c0_42] {strides = array<i32: 2, 1>} : memref<10x128xf32, #tpu.memory_space<vmem>>, vector<4x128xf32>
    %c1_43 = arith.constant 1 : index
    %c0_44 = arith.constant 0 : index
    %45 = tpu.strided_load %arg17[%c1_43, %c0_44] {strides = array<i32: 2, 1>} : memref<10x128xf32, #tpu.memory_space<vmem>>, vector<4x128xf32>
    %c2_45 = arith.constant 2 : index
    %c0_46 = arith.constant 0 : index
    %46 = tpu.strided_load %arg17[%c2_45, %c0_46] {strides = array<i32: 2, 1>} : memref<10x128xf32, #tpu.memory_space<vmem>>, vector<4x128xf32>
    %c3_47 = arith.constant 3 : index
    %c0_48 = arith.constant 0 : index
    %47 = tpu.strided_load %arg17[%c3_47, %c0_48] {strides = array<i32: 2, 1>} : memref<10x128xf32, #tpu.memory_space<vmem>>, vector<4x128xf32>
    %48 = tpu.concatenate %44, %45, %46, %47 in 1 : vector<4x128xf32>, vector<4x128xf32>, vector<4x128xf32>, vector<4x128xf32> -> vector<4x512xf32>
    %cst_49 = arith.constant dense<0.000000e+00> : vector<4x128xf32>
    %49 = tpu.matmul %48, %41, %cst_49 {dimension_numbers = #tpu.dot_dimension_numbers<[1], [0], [0], [1], [0, 0, 1, 1], [], []>} : vector<4x512xf32>, vector<512x128xf32>, vector<4x128xf32> -> vector<4x128xf32>
    %50 = vector.broadcast %42 : vector<1x128xf32> to vector<4x128xf32>
    %51 = arith.addf %49, %50 : vector<4x128xf32>
    %cst_50 = arith.constant 0.000000e+00 : f32
    %52 = vector.broadcast %cst_50 : f32 to vector<4x128xf32>
    %53 = arith.cmpf oge, %51, %52 : vector<4x128xf32>
    %cst_51 = arith.constant 2.000000e-01 : f32
    %54 = vector.broadcast %cst_51 : f32 to vector<4x128xf32>
    %55 = arith.mulf %54, %51 : vector<4x128xf32>
    %56 = arith.select %53, %51, %55 : vector<4x128xi1>, vector<4x128xf32>
    %57 = arith.extui %0 : i1 to i32
    %c0_i32_52 = arith.constant 0 : i32
    %58 = arith.cmpi ne, %57, %c0_i32_52 : i32
    scf.if %58 {
      %c2_i32 = arith.constant 2 : i32
      %77 = tpu.memref_slice %arg14[%c2_i32] : memref<3x!tpu.dma_semaphore, #tpu.memory_space<semaphore_mem>> -> memref<1x!tpu.dma_semaphore, #tpu.memory_space<semaphore_mem>>
      %78 = tpu.memref_squeeze %77 : memref<1x!tpu.dma_semaphore, #tpu.memory_space<semaphore_mem>> -> memref<!tpu.dma_semaphore, #tpu.memory_space<semaphore_mem>>
      tpu.wait_dma2 semaphore(%78 : memref<!tpu.dma_semaphore, #tpu.memory_space<semaphore_mem>>) src(%arg5 : memref<512x256xf32, #tpu.memory_space<any>>) dst(%arg13 : memref<512x256xf32, #tpu.memory_space<vmem>>)
    } else {
    }
    %c0_53 = arith.constant 0 : index
    %c0_54 = arith.constant 0 : index
    %59 = vector.load %arg13[%c0_53, %c0_54] : memref<512x256xf32, #tpu.memory_space<vmem>>, vector<512x256xf32>
    %c0_55 = arith.constant 0 : index
    %c0_56 = arith.constant 0 : index
    %60 = vector.load %arg9[%c0_55, %c0_56] : memref<1x256xf32, #tpu.memory_space<vmem>>, vector<1x256xf32>
    %c0_57 = arith.constant 0 : index
    %c0_58 = arith.constant 0 : index
    %61 = vector.load %arg18[%c0_57, %c0_58] : memref<4x128xf32, #tpu.memory_space<vmem>>, vector<4x128xf32>
    tpu.vector_store %arg18[%c0_57, %c0_58], %56 {strides = array<i32>} : memref<4x128xf32, #tpu.memory_space<vmem>>, vector<4x128xf32>,
    %c0_59 = arith.constant 0 : index
    %c0_60 = arith.constant 0 : index
    %62 = vector.load %arg18[%c0_59, %c0_60] : memref<4x128xf32, #tpu.memory_space<vmem>>, vector<1x128xf32>
    %c1_61 = arith.constant 1 : index
    %c0_62 = arith.constant 0 : index
    %63 = vector.load %arg18[%c1_61, %c0_62] : memref<4x128xf32, #tpu.memory_space<vmem>>, vector<1x128xf32>
    %c2_63 = arith.constant 2 : index
    %c0_64 = arith.constant 0 : index
    %64 = vector.load %arg18[%c2_63, %c0_64] : memref<4x128xf32, #tpu.memory_space<vmem>>, vector<1x128xf32>
    %c3_65 = arith.constant 3 : index
    %c0_66 = arith.constant 0 : index
    %65 = vector.load %arg18[%c3_65, %c0_66] : memref<4x128xf32, #tpu.memory_space<vmem>>, vector<1x128xf32>
    %66 = tpu.concatenate %62, %63, %64, %65 in 1 : vector<1x128xf32>, vector<1x128xf32>, vector<1x128xf32>, vector<1x128xf32> -> vector<1x512xf32>
    %cst_67 = arith.constant dense<0.000000e+00> : vector<1x256xf32>
    %67 = tpu.matmul %66, %59, %cst_67 {dimension_numbers = #tpu.dot_dimension_numbers<[1], [0], [0], [1], [0, 0, 1, 1], [], []>} : vector<1x512xf32>, vector<512x256xf32>, vector<1x256xf32> -> vector<1x256xf32>
    %68 = arith.addf %67, %60 : vector<1x256xf32>
    %cst_68 = arith.constant 0.000000e+00 : f32
    %69 = vector.broadcast %cst_68 : f32 to vector<1x256xf32>
    %70 = arith.cmpf oge, %68, %69 : vector<1x256xf32>
    %cst_69 = arith.constant 2.000000e-01 : f32
    %71 = vector.broadcast %cst_69 : f32 to vector<1x256xf32>
    %72 = arith.mulf %71, %68 : vector<1x256xf32>
    %73 = arith.select %70, %68, %72 : vector<1x256xi1>, vector<1x256xf32>
    %c0_70 = arith.constant 0 : index
    %c0_71 = arith.constant 0 : index
    %c0_72 = arith.constant 0 : index
    %74 = vector.load %arg10[%c0_70, %c0_71, %c0_72] : memref<1x1x256xf32, #tpu.memory_space<vmem>>, vector<1x1x256xf32>
    %75 = vector.shape_cast %74 : vector<1x1x256xf32> to vector<1x256xf32>
    %76 = vector.shape_cast %73 : vector<1x256xf32> to vector<1x1x256xf32>
    tpu.vector_store %arg10[%c0_70, %c0_71, %c0_72], %76 {strides = array<i32>} : memref<1x1x256xf32, #tpu.memory_space<vmem>>, vector<1x1x256xf32>,
    return
  }
  func.func @transform_0(%arg0: i32) -> (i32, i32, i32) {
    %c0_i32 = arith.constant 0 : i32
    %c0_i32_0 = arith.constant 0 : i32
    %c0_i32_1 = arith.constant 0 : i32
    return %arg0, %c0_i32, %c0_i32_0 : i32, i32, i32
  }
  func.func @transform_1(%arg0: i32) -> (i32, i32) {
    %c0_i32 = arith.constant 0 : i32
    %c0_i32_0 = arith.constant 0 : i32
    %c0_i32_1 = arith.constant 0 : i32
    return %c0_i32, %c0_i32_0 : i32, i32
  }
  func.func @transform_5(%arg0: i32) -> (i32, i32) {
    %c0_i32 = arith.constant 0 : i32
    %c0_i32_0 = arith.constant 0 : i32
    %c0_i32_1 = arith.constant 0 : i32
    return %c0_i32, %c0_i32_0 : i32, i32
  }
  func.func @transform_6(%arg0: i32) -> (i32, i32) {
    %c0_i32 = arith.constant 0 : i32
    %c0_i32_0 = arith.constant 0 : i32
    %c0_i32_1 = arith.constant 0 : i32
    return %c0_i32, %c0_i32_0 : i32, i32
  }
  func.func @transform_7(%arg0: i32) -> (i32, i32) {
    %c0_i32 = arith.constant 0 : i32
    %c0_i32_0 = arith.constant 0 : i32
    %c0_i32_1 = arith.constant 0 : i32
    return %c0_i32, %c0_i32_0 : i32, i32
  }
  func.func @transform_8(%arg0: i32) -> (i32, i32) {
    %c0_i32 = arith.constant 0 : i32
    %c0_i32_0 = arith.constant 0 : i32
    %c0_i32_1 = arith.constant 0 : i32
    return %c0_i32, %c0_i32_0 : i32, i32
  }
  func.func @transform_9(%arg0: i32) -> (i32, i32, i32) {
    %c0_i32 = arith.constant 0 : i32
    %c0_i32_0 = arith.constant 0 : i32
    %c0_i32_1 = arith.constant 0 : i32
    return %arg0, %c0_i32, %c0_i32_0 : i32, i32, i32
  }
}

</mosaic_0001>

<llo_original>
// kernel: two_layer_scale2_forward.1
$region0: #{two_layer_scale2_forward.1}
  #allocation0 [shape = 'u32[]', space=smem, size = 0x4, offset = 0x4, fixed_abs, tag = 'smem constant byte address 0x4 - core index']
  #allocation1 [shape = 'u32[72,128]{1,0:T(1,128)}', space=vmem, size = 0x9000, scoped, tag = 'internal scratch']
  #allocation2 [shape = 'f32[256,128]{1,0:T(8,128)}', space=vmem, size = 0x20000, scoped, tag = 'scratch operand']
  #allocation3 [shape = 'f32[512,128]{1,0:T(8,128)}', space=vmem, size = 0x40000, scoped, tag = 'scratch operand']
  #allocation4 [shape = 'f32[512,256]{1,0:T(8,128)}', space=vmem, size = 0x80000, scoped, tag = 'scratch operand']
  #allocation5 [shape = 's32[3]{0}', space=sflag, size = 0xc, scoped, tag = 'scratch operand']
  #allocation6 [shape = 'f32[34,64]{1,0:T(8,128)}', space=vmem, size = 0x5000, scoped, tag = 'scratch operand']
  #allocation7 [shape = 'f32[18,64]{1,0:T(8,128)}', space=vmem, size = 0x3000, scoped, tag = 'scratch operand']
  #allocation8 [shape = 'f32[10,128]{1,0:T(8,128)}', space=vmem, size = 0x2000, scoped, tag = 'scratch operand']
  #allocation9 [shape = 'f32[4,128]{1,0:T(4,128)}', space=vmem, size = 0x800, scoped, tag = 'scratch operand']
  #allocation10 [shape = 's32[]', space=sflag, size = 0x4, offset = 0, fixed_abs, tag = 'sflag constant byte address 0x0 - dummy sync flag']
  #allocation11 [shape = 's32[]', space=sflag, size = 0x4, offset = 0, fixed_abs, tag = 'sflag constant byte address 0x0 - dummy sync flag']
  #allocation12 [shape = 's32[]', space=sflag, size = 0x4, offset = 0, fixed_abs, tag = 'sflag constant byte address 0x0 - dummy sync flag']
  #allocation13 [shape = 's32[]', space=sflag, size = 0x4, offset = 0, fixed_abs, tag = 'sflag constant byte address 0x0 - dummy sync flag']
  #allocation14 [shape = 'u32[]', space=smem, size = 0x4, offset = 0x44, fixed_abs, tag = 'smem constant byte address 0x44 - assertion arg 0']
  #allocation15 [shape = 'u32[]', space=smem, size = 0x4, offset = 0x48, fixed_abs, tag = 'smem constant byte address 0x48 - assertion arg 1']
  %s0 = inlined_call_operand.vmem [shape: f32[2,32,64], index: 0, kind: input, shape index: {}]
  %s1 = inlined_call_operand.vmem [shape: f32[256,64], index: 1, kind: input, shape index: {}]
  %s2 = inlined_call_operand.vmem [shape: f32[256,128], index: 2, kind: input, shape index: {}]
  %s3 = inlined_call_operand.vmem [shape: f32[512,128], index: 3, kind: input, shape index: {}]
  %s4 = inlined_call_operand.hbm [shape: f32[512,256], index: 4, kind: input, shape index: {}]
  %s5 = inlined_call_operand.vmem [shape: f32[1,64], index: 5, kind: input, shape index: {}]
  %s6 = inlined_call_operand.vmem [shape: f32[1,128], index: 6, kind: input, shape index: {}]
  %s7 = inlined_call_operand.vmem [shape: f32[1,128], index: 7, kind: input, shape index: {}]
  %s8 = inlined_call_operand.vmem [shape: f32[1,256], index: 8, kind: input, shape index: {}]
  %s9 = inlined_call_operand.vmem [shape: f32[2,1,256], index: 9, kind: output, shape index: {}]
  %s10 = sld [smem:[#allocation0]]
  $region115: #{two_layer_scale2_forward.1} parent=0
    _
  %s12 = ssub.s32 1, %s10
  %s13 = scalar_select 0, %s12, %s10
  loop: start=0, step=1, limit=4
  $region2: #{two_layer_scale2_forward.1} parent=0 // loop_pre_header
    _
  $region3: #{two_layer_scale2_forward.1} parent=0 // loop_header
    %s15 = sphi 0, %s19
    %p16 = scmp.ge.s32.totalorder %s15, 4
    %s25 = sphi 0, %s27
    %s28 = sphi 0, %s25
    %s29 = sphi 0, %s28
    %s45 = sphi 0, %s29
    %s49 = sphi 0, %s49
    %s51 = sphi 0, %s49
    %s52 = sphi 0, %s51
    %s66 = sphi 0, %s52
    %s70 = sphi 0, %s70
    %s72 = sphi 0, %s70
    %s73 = sphi 0, %s72
    %s87 = sphi 0, %s73
    %s91 = sphi 0, %s91
    %s93 = sphi 0, %s91
    %s94 = sphi 0, %s93
    %s108 = sphi 0, %s94
    %s112 = sphi 0, %s112
    %s114 = sphi 0, %s112
    %s115 = sphi 0, %s114
    %s129 = sphi 0, %s115
    %s133 = sphi 0, %s133
    %s135 = sphi 0, %s133
    %s136 = sphi 0, %s135
    %s150 = sphi 0, %s136
    %s156 = sphi 0, %s158
    %s159 = sphi 0, %s156
    %s160 = sphi 0, %s159
    %s176 = sphi 0, %s160
  $region4: #{two_layer_scale2_forward.1} parent=0 // loop_header_branch
    %18 = sbr.rel (%p16) target = $region8
  $region5: #{two_layer_scale2_forward.1} parent=0 // loop_body
    %s20 = ssub.s32 %s15, 1
    %s21 = ssub.s32 %s15, 2
    %s22 = sadd.s32 %s15, 1
    %s23 = ssub.s32 %s15, %s22
    %p24 = scmp.eq.s32.totalorder %s23, 0
    %s26 = sadd.s32 %s25, 1
    %s27 = scalar_select %p24, %s25, %s26
    %p30 = pneg %p24
    %p31 = scmp.eq.s32.totalorder %s15, 1
    %p32 = por %p30, %p31
    %p33 = scmp.ne.s32.totalorder %s25, %s28
    %p34 = scmp.eq.s32.totalorder %s15, 0
    %p35 = por %p33, %p34
    %p36 = scmp.ne.s32.totalorder %s25, %s28
    %p37 = scmp.eq.s32.totalorder %s20, 1
    %p38 = por %p36, %p37
    %p39 = scmp.ne.s32.totalorder %s28, %s29
    %p40 = scmp.eq.s32.totalorder %s20, 0
    %p41 = por %p39, %p40
    %p42 = scmp.ne.s32.totalorder %s28, %s29
    %p43 = scmp.eq.s32.totalorder %s21, 1
    %p44 = por %p42, %p43
    %p46 = scmp.ne.s32.totalorder %s29, %s45
    %p47 = scmp.eq.s32.totalorder %s21, 0
    %p48 = por %p46, %p47
    %s50 = sadd.s32 %s49, 1
    %p53 = scmp.eq.s32.totalorder %s15, 1
    %p54 = scmp.ne.s32.totalorder %s49, %s51
    %p55 = scmp.eq.s32.totalorder %s15, 0
    %p56 = por %p54, %p55
    %p57 = scmp.ne.s32.totalorder %s49, %s51
    %p58 = scmp.eq.s32.totalorder %s20, 1
    %p59 = por %p57, %p58
    %p60 = scmp.ne.s32.totalorder %s51, %s52
    %p61 = scmp.eq.s32.totalorder %s20, 0
    %p62 = por %p60, %p61
    %p63 = scmp.ne.s32.totalorder %s51, %s52
    %p64 = scmp.eq.s32.totalorder %s21, 1
    %p65 = por %p63, %p64
    %p67 = scmp.ne.s32.totalorder %s52, %s66
    %p68 = scmp.eq.s32.totalorder %s21, 0
    %p69 = por %p67, %p68
    %s71 = sadd.s32 %s70, 1
    %p74 = scmp.eq.s32.totalorder %s15, 1
    %p75 = scmp.ne.s32.totalorder %s70, %s72
    %p76 = scmp.eq.s32.totalorder %s15, 0
    %p77 = por %p75, %p76
    %p78 = scmp.ne.s32.totalorder %s70, %s72
    %p79 = scmp.eq.s32.totalorder %s20, 1
    %p80 = por %p78, %p79
    %p81 = scmp.ne.s32.totalorder %s72, %s73
    %p82 = scmp.eq.s32.totalorder %s20, 0
    %p83 = por %p81, %p82
    %p84 = scmp.ne.s32.totalorder %s72, %s73
    %p85 = scmp.eq.s32.totalorder %s21, 1
    %p86 = por %p84, %p85
    %p88 = scmp.ne.s32.totalorder %s73, %s87
    %p89 = scmp.eq.s32.totalorder %s21, 0
    %p90 = por %p88, %p89
    %s92 = sadd.s32 %s91, 1
    %p95 = scmp.eq.s32.totalorder %s15, 1
    %p96 = scmp.ne.s32.totalorder %s91, %s93
    %p97 = scmp.eq.s32.totalorder %s15, 0
    %p98 = por %p96, %p97
    %p99 = scmp.ne.s32.totalorder %s91, %s93
    %p100 = scmp.eq.s32.totalorder %s20, 1
    %p101 = por %p99, %p100
    %p102 = scmp.ne.s32.totalorder %s93, %s94
    %p103 = scmp.eq.s32.totalorder %s20, 0
    %p104 = por %p102, %p103
    %p105 = scmp.ne.s32.totalorder %s93, %s94
    %p106 = scmp.eq.s32.totalorder %s21, 1
    %p107 = por %p105, %p106
    %p109 = scmp.ne.s32.totalorder %s94, %s108
    %p110 = scmp.eq.s32.totalorder %s21, 0
    %p111 = por %p109, %p110
    %s113 = sadd.s32 %s112, 1
    %p116 = scmp.eq.s32.totalorder %s15, 1
    %p117 = scmp.ne.s32.totalorder %s112, %s114
    %p118 = scmp.eq.s32.totalorder %s15, 0
    %p119 = por %p117, %p118
    %p120 = scmp.ne.s32.totalorder %s112, %s114
    %p121 = scmp.eq.s32.totalorder %s20, 1
    %p122 = por %p120, %p121
    %p123 = scmp.ne.s32.totalorder %s114, %s115
    %p124 = scmp.eq.s32.totalorder %s20, 0
    %p125 = por %p123, %p124
    %p126 = scmp.ne.s32.totalorder %s114, %s115
    %p127 = scmp.eq.s32.totalorder %s21, 1
    %p128 = por %p126, %p127
    %p130 = scmp.ne.s32.totalorder %s115, %s129
    %p131 = scmp.eq.s32.totalorder %s21, 0
    %p132 = por %p130, %p131
    %s134 = sadd.s32 %s133, 1
    %p137 = scmp.eq.s32.totalorder %s15, 1
    %p138 = scmp.ne.s32.totalorder %s133, %s135
    %p139 = scmp.eq.s32.totalorder %s15, 0
    %p140 = por %p138, %p139
    %p141 = scmp.ne.s32.totalorder %s133, %s135
    %p142 = scmp.eq.s32.totalorder %s20, 1
    %p143 = por %p141, %p142
    %p144 = scmp.ne.s32.totalorder %s135, %s136
    %p145 = scmp.eq.s32.totalorder %s20, 0
    %p146 = por %p144, %p145
    %p147 = scmp.ne.s32.totalorder %s135, %s136
    %p148 = scmp.eq.s32.totalorder %s21, 1
    %p149 = por %p147, %p148
    %p151 = scmp.ne.s32.totalorder %s136, %s150
    %p152 = scmp.eq.s32.totalorder %s21, 0
    %p153 = por %p151, %p152
    %s154 = ssub.s32 %s15, %s22
    %p155 = scmp.eq.s32.totalorder %s154, 0
    %s157 = sadd.s32 %s156, 1
    %s158 = scalar_select %p155, %s156, %s157
    %p161 = pneg %p155
    %p162 = scmp.eq.s32.totalorder %s15, 1
    %p163 = por %p161, %p162
    %p164 = scmp.ne.s32.totalorder %s156, %s159
    %p165 = scmp.eq.s32.totalorder %s15, 0
    %p166 = por %p164, %p165
    %p167 = scmp.ne.s32.totalorder %s156, %s159
    %p168 = scmp.eq.s32.totalorder %s20, 1
    %p169 = por %p167, %p168
    %p170 = scmp.ne.s32.totalorder %s159, %s160
    %p171 = scmp.eq.s32.totalorder %s20, 0
    %p172 = por %p170, %p171
    %p173 = scmp.ne.s32.totalorder %s159, %s160
    %p174 = scmp.eq.s32.totalorder %s21, 1
    %p175 = por %p173, %p174
    %p177 = scmp.ne.s32.totalorder %s160, %s176
    %p178 = scmp.eq.s32.totalorder %s21, 0
    %p179 = por %p177, %p178
    %p180 = scmp.le.s32.totalorder 1, %s15
    %p181 = scmp.lt.s32.totalorder %s15, 3
    %p182 = pnand %p180, %p181
    %p183 = pneg %p182
    // Predicated region
    $region9: #{two_layer_scale2_forward.1} parent=5 // pred_check
      _
    $region10: #{two_layer_scale2_forward.1} parent=5 // pred_check_branch
      %185 = sbr.rel (%p182) target = $region12
    $region11: #{two_layer_scale2_forward.1} parent=5 // pred_region
      %s186 = ssub.s32 %s15, 1
      // Predicated region
      $region13: #{two_layer_scale2_forward.1} parent=11 // pred_check
        %p187 = pneg %p62
      $region14: #{two_layer_scale2_forward.1} parent=11 // pred_check_branch
        %189 = sbr.rel (%p187) target = $region16
      $region15: #{two_layer_scale2_forward.1} parent=11 // pred_region
        _
      $region16: #{two_layer_scale2_forward.1} parent=11 // pred_fallthru
        _
      // Predicated region
      $region17: #{two_layer_scale2_forward.1} parent=11 // pred_check
        %p190 = pneg %p83
      $region18: #{two_layer_scale2_forward.1} parent=11 // pred_check_branch
        %192 = sbr.rel (%p190) target = $region20
      $region19: #{two_layer_scale2_forward.1} parent=11 // pred_region
        _
      $region20: #{two_layer_scale2_forward.1} parent=11 // pred_fallthru
        _
      // Predicated region
      $region21: #{two_layer_scale2_forward.1} parent=11 // pred_check
        %p193 = pneg %p104
      $region22: #{two_layer_scale2_forward.1} parent=11 // pred_check_branch
        %195 = sbr.rel (%p193) target = $region24
      $region23: #{two_layer_scale2_forward.1} parent=11 // pred_region
        _
      $region24: #{two_layer_scale2_forward.1} parent=11 // pred_fallthru
        _
      // Predicated region
      $region25: #{two_layer_scale2_forward.1} parent=11 // pred_check
        %p196 = pneg %p125
      $region26: #{two_layer_scale2_forward.1} parent=11 // pred_check_branch
        %198 = sbr.rel (%p196) target = $region28
      $region27: #{two_layer_scale2_forward.1} parent=11 // pred_region
        _
      $region28: #{two_layer_scale2_forward.1} parent=11 // pred_fallthru
        _
      // Predicated region
      $region29: #{two_layer_scale2_forward.1} parent=11 // pred_check
        %p199 = pneg %p146
      $region30: #{two_layer_scale2_forward.1} parent=11 // pred_check_branch
        %201 = sbr.rel (%p199) target = $region32
      $region31: #{two_layer_scale2_forward.1} parent=11 // pred_region
        _
      $region32: #{two_layer_scale2_forward.1} parent=11 // pred_fallthru
        _
    $region12: #{two_layer_scale2_forward.1} parent=5 // pred_fallthru
      _
    %p202 = scmp.lt.s32.totalorder %s15, 2
    // Predicated region
    $region33: #{two_layer_scale2_forward.1} parent=5 // pred_check
      %p203 = pneg %p202
    $region34: #{two_layer_scale2_forward.1} parent=5 // pred_check_branch
      %205 = sbr.rel (%p203) target = $region36
    $region35: #{two_layer_scale2_forward.1} parent=5 // pred_region
      // Predicated region
      $region37: #{two_layer_scale2_forward.1} parent=35 // pred_check
        %p206 = pneg %p35
      $region38: #{two_layer_scale2_forward.1} parent=35 // pred_check_branch
        %208 = sbr.rel (%p206) target = $region40
      $region39: #{two_layer_scale2_forward.1} parent=35 // pred_region
        %p209 = scmp.lt.s32.totalorder %s15, 1
        %s210 = scalar_select %p209, %s15, 1
        %s211 = smul.addr %s210, 4
        %s212 = smul.addr %s211, 8
        %s213 = scalar_lea.vmem %s0, %s212
      $region40: #{two_layer_scale2_forward.1} parent=35 // pred_fallthru
        _
    $region36: #{two_layer_scale2_forward.1} parent=5 // pred_fallthru
      _
    %p214 = scmp.le.s32.totalorder 1, %s15
    %p215 = scmp.lt.s32.totalorder %s15, 3
    %p216 = pnand %p214, %p215
    %p217 = pneg %p216
    // Predicated region
    $region41: #{two_layer_scale2_forward.1} parent=5 // pred_check
      _
    $region42: #{two_layer_scale2_forward.1} parent=5 // pred_check_branch
      %219 = sbr.rel (%p216) target = $region44
    $region43: #{two_layer_scale2_forward.1} parent=5 // pred_region
      %s220 = ssub.s32 %s15, 1
      %p221 = scmp.lt.s32.totalorder %s20, 1
      %s222 = scalar_select %p221, %s20, 1
      %s223 = smul.addr %s222, 4
      %s224 = smul.addr %s223, 8
      %s225 = scalar_lea.vmem %s0, %s224
      %p226 = pneg %p41
      %p227 = pneg %p38
      %p228 = pneg %p62
      %p229 = pneg %p59
      %p230 = pneg %p83
      %p231 = pneg %p80
      %p232 = pneg %p104
      %p233 = pneg %p101
      %p234 = pneg %p125
      %p235 = pneg %p122
      %p236 = pneg %p146
      %p237 = pneg %p143
      %p238 = pneg %p172
      %p239 = pneg %p169
      %p240 = scmp.lt.s32.totalorder %s20, 1
      %s241 = scalar_select %p240, %s20, 1
      %s242 = smul.addr %s241, 2
      %s243 = scalar_lea.vmem %s9, %s242
      %p244 = scmp.lt.s32.totalorder %s20, 1
      %s245 = scalar_select %p244, %s20, 1
      %s246 = smul.addr %s245, 4
      %s247 = smul.addr %s246, 8
      %s248 = scalar_lea.vmem %s0, %s247
      %p249 = scmp.lt.s32.totalorder %s20, 1
      %s250 = scalar_select %p249, %s20, 1
      %s251 = smul.addr %s250, 2
      %s252 = scalar_lea.vmem %s9, %s251
      %p253 = scmp.eq.s32.totalorder %s20, 0
      // Predicated region
      $region45: #{two_layer_scale2_forward.1} parent=43 // pred_check
        %p254 = pneg %p253
      $region46: #{two_layer_scale2_forward.1} parent=43 // pred_check_branch
        %256 = sbr.rel (%p254) target = $region48
      $region47: #{two_layer_scale2_forward.1} parent=43 // pred_region
        // Predicated region
        $region49: #{two_layer_scale2_forward.1} parent=47 // pred_check
          _
        $region50: #{two_layer_scale2_forward.1} parent=47 // pred_check_branch
          %258 = sbr.rel (0) target = $region52
        $region51: #{two_layer_scale2_forward.1} parent=47 // pred_region
          loop: start=0, step=1, limit=1
          $region53: #{two_layer_scale2_forward.1} parent=51 // loop_pre_header
            _
          $region54: #{two_layer_scale2_forward.1} parent=51 // loop_header
            %s260 = sphi 0, %s264
            %p261 = scmp.ge.s32.totalorder %s260, 1
            %s265 = sphi %s2, %s2
            %s266 = sphi [#allocation2], [#allocation2]
          $region55: #{two_layer_scale2_forward.1} parent=51 // loop_header_branch
            %263 = sbr.rel (%p261) target = $region59
          $region56: #{two_layer_scale2_forward.1} parent=51 // loop_body
            %v267 = vld [vmem:[%s265] sm:$0xff]
            %268 = vst [vmem:[%s266] sm:$0xff] %v267
            %v269 = vld [vmem:[%s265 + $0x8] sm:$0xff]
            %270 = vst [vmem:[%s266 + $0x8] sm:$0xff] %v269
            %v271 = vld [vmem:[%s265 + $0x10] sm:$0xff]
            %272 = vst [vmem:[%s266 + $0x10] sm:$0xff] %v271
            %v273 = vld [vmem:[%s265 + $0x18] sm:$0xff]
            %274 = vst [vmem:[%s266 + $0x18] sm:$0xff] %v273
            %v275 = vld [vmem:[%s265 + $0x20] sm:$0xff]
            %276 = vst [vmem:[%s266 + $0x20] sm:$0xff] %v275
            %v277 = vld [vmem:[%s265 + $0x28] sm:$0xff]
            %278 = vst [vmem:[%s266 + $0x28] sm:$0xff] %v277
            %v279 = vld [vmem:[%s265 + $0x30] sm:$0xff]
            %280 = vst [vmem:[%s266 + $0x30] sm:$0xff] %v279
            %v281 = vld [vmem:[%s265 + $0x38] sm:$0xff]
            %282 = vst [vmem:[%s266 + $0x38] sm:$0xff] %v281
            %v283 = vld [vmem:[%s265 + $0x40] sm:$0xff]
            %284 = vst [vmem:[%s266 + $0x40] sm:$0xff] %v283
            %v285 = vld [vmem:[%s265 + $0x48] sm:$0xff]
            %286 = vst [vmem:[%s266 + $0x48] sm:$0xff] %v285
            %v287 = vld [vmem:[%s265 + $0x50] sm:$0xff]
            %288 = vst [vmem:[%s266 + $0x50] sm:$0xff] %v287
            %v289 = vld [vmem:[%s265 + $0x58] sm:$0xff]
            %290 = vst [vmem:[%s266 + $0x58] sm:$0xff] %v289
            %v291 = vld [vmem:[%s265 + $0x60] sm:$0xff]
            %292 = vst [vmem:[%s266 + $0x60] sm:$0xff] %v291
            %v293 = vld [vmem:[%s265 + $0x68] sm:$0xff]
            %294 = vst [vmem:[%s266 + $0x68] sm:$0xff] %v293
            %v295 = vld [vmem:[%s265 + $0x70] sm:$0xff]
            %296 = vst [vmem:[%s266 + $0x70] sm:$0xff] %v295
            %v297 = vld [vmem:[%s265 + $0x78] sm:$0xff]
            %298 = vst [vmem:[%s266 + $0x78] sm:$0xff] %v297
            %v299 = vld [vmem:[%s265 + $0x80] sm:$0xff]
            %300 = vst [vmem:[%s266 + $0x80] sm:$0xff] %v299
            %v301 = vld [vmem:[%s265 + $0x88] sm:$0xff]
            %302 = vst [vmem:[%s266 + $0x88] sm:$0xff] %v301
            %v303 = vld [vmem:[%s265 + $0x90] sm:$0xff]
            %304 = vst [vmem:[%s266 + $0x90] sm:$0xff] %v303
            %v305 = vld [vmem:[%s265 + $0x98] sm:$0xff]
            %306 = vst [vmem:[%s266 + $0x98] sm:$0xff] %v305
            %v307 = vld [vmem:[%s265 + $0xa0] sm:$0xff]
            %308 = vst [vmem:[%s266 + $0xa0] sm:$0xff] %v307
            %v309 = vld [vmem:[%s265 + $0xa8] sm:$0xff]
            %310 = vst [vmem:[%s266 + $0xa8] sm:$0xff] %v309
            %v311 = vld [vmem:[%s265 + $0xb0] sm:$0xff]
            %312 = vst [vmem:[%s266 + $0xb0] sm:$0xff] %v311
            %v313 = vld [vmem:[%s265 + $0xb8] sm:$0xff]
            %314 = vst [vmem:[%s266 + $0xb8] sm:$0xff] %v313
            %v315 = vld [vmem:[%s265 + $0xc0] sm:$0xff]
            %316 = vst [vmem:[%s266 + $0xc0] sm:$0xff] %v315
            %v317 = vld [vmem:[%s265 + $0xc8] sm:$0xff]
            %318 = vst [vmem:[%s266 + $0xc8] sm:$0xff] %v317
            %v319 = vld [vmem:[%s265 + $0xd0] sm:$0xff]
            %320 = vst [vmem:[%s266 + $0xd0] sm:$0xff] %v319
            %v321 = vld [vmem:[%s265 + $0xd8] sm:$0xff]
            %322 = vst [vmem:[%s266 + $0xd8] sm:$0xff] %v321
            %v323 = vld [vmem:[%s265 + $0xe0] sm:$0xff]
            %324 = vst [vmem:[%s266 + $0xe0] sm:$0xff] %v323
            %v325 = vld [vmem:[%s265 + $0xe8] sm:$0xff]
            %326 = vst [vmem:[%s266 + $0xe8] sm:$0xff] %v325
            %v327 = vld [vmem:[%s265 + $0xf0] sm:$0xff]
            %328 = vst [vmem:[%s266 + $0xf0] sm:$0xff] %v327
            %v329 = vld [vmem:[%s265 + $0xf8] sm:$0xff]
            %330 = vst [vmem:[%s266 + $0xf8] sm:$0xff] %v329
          $region57: #{two_layer_scale2_forward.1} parent=51 // loop_footer
            %s264 = sadd.s32 1, %s260
          $region58: #{two_layer_scale2_forward.1} parent=51 // loop_footer_branch
            %259 = sbr.rel target = $region54
          $region59: #{two_layer_scale2_forward.1} parent=51 // loop_exit
            _
        $region52: #{two_layer_scale2_forward.1} parent=47 // pred_fallthru
          _
        // Predicated region
        $region60: #{two_layer_scale2_forward.1} parent=47 // pred_check
          _
        $region61: #{two_layer_scale2_forward.1} parent=47 // pred_check_branch
          %332 = sbr.rel target = $region63
        $region62: #{two_layer_scale2_forward.1} parent=47 // pred_region
          _
        $region63: #{two_layer_scale2_forward.1} parent=47 // pred_fallthru
          _
        // Predicated region
        $region64: #{two_layer_scale2_forward.1} parent=47 // pred_check
          _
        $region65: #{two_layer_scale2_forward.1} parent=47 // pred_check_branch
          %335 = sbr.rel (0) target = $region67
        $region66: #{two_layer_scale2_forward.1} parent=47 // pred_region
          %336 = vsyncadd [#allocation5], 4096
        $region67: #{two_layer_scale2_forward.1} parent=47 // pred_fallthru
          _
        %s337 = scalar_lea.sflag [#allocation5], 1
        // Predicated region
        $region68: #{two_layer_scale2_forward.1} parent=47 // pred_check
          _
        $region69: #{two_layer_scale2_forward.1} parent=47 // pred_check_branch
          %339 = sbr.rel (0) target = $region71
        $region70: #{two_layer_scale2_forward.1} parent=47 // pred_region
          loop: start=0, step=1, limit=1
          $region72: #{two_layer_scale2_forward.1} parent=70 // loop_pre_header
            _
          $region73: #{two_layer_scale2_forward.1} parent=70 // loop_header
            %s341 = sphi 0, %s345
            %p342 = scmp.ge.s32.totalorder %s341, 1
            %s346 = sphi %s3, %s3
            %s347 = sphi [#allocation3], [#allocation3]
          $region74: #{two_layer_scale2_forward.1} parent=70 // loop_header_branch
            %344 = sbr.rel (%p342) target = $region78
          $region75: #{two_layer_scale2_forward.1} parent=70 // loop_body
            %v348 = vld [vmem:[%s346] sm:$0xff]
            %349 = vst [vmem:[%s347] sm:$0xff] %v348
            %v350 = vld [vmem:[%s346 + $0x8] sm:$0xff]
            %351 = vst [vmem:[%s347 + $0x8] sm:$0xff] %v350
            %v352 = vld [vmem:[%s346 + $0x10] sm:$0xff]
            %353 = vst [vmem:[%s347 + $0x10] sm:$0xff] %v352
            %v354 = vld [vmem:[%s346 + $0x18] sm:$0xff]
            %355 = vst [vmem:[%s347 + $0x18] sm:$0xff] %v354
            %v356 = vld [vmem:[%s346 + $0x20] sm:$0xff]
            %357 = vst [vmem:[%s347 + $0x20] sm:$0xff] %v356
            %v358 = vld [vmem:[%s346 + $0x28] sm:$0xff]
            %359 = vst [vmem:[%s347 + $0x28] sm:$0xff] %v358
            %v360 = vld [vmem:[%s346 + $0x30] sm:$0xff]
            %361 = vst [vmem:[%s347 + $0x30] sm:$0xff] %v360
            %v362 = vld [vmem:[%s346 + $0x38] sm:$0xff]
            %363 = vst [vmem:[%s347 + $0x38] sm:$0xff] %v362
            %v364 = vld [vmem:[%s346 + $0x40] sm:$0xff]
            %365 = vst [vmem:[%s347 + $0x40] sm:$0xff] %v364
            %v366 = vld [vmem:[%s346 + $0x48] sm:$0xff]
            %367 = vst [vmem:[%s347 + $0x48] sm:$0xff] %v366
            %v368 = vld [vmem:[%s346 + $0x50] sm:$0xff]
            %369 = vst [vmem:[%s347 + $0x50] sm:$0xff] %v368
            %v370 = vld [vmem:[%s346 + $0x58] sm:$0xff]
            %371 = vst [vmem:[%s347 + $0x58] sm:$0xff] %v370
            %v372 = vld [vmem:[%s346 + $0x60] sm:$0xff]
            %373 = vst [vmem:[%s347 + $0x60] sm:$0xff] %v372
            %v374 = vld [vmem:[%s346 + $0x68] sm:$0xff]
            %375 = vst [vmem:[%s347 + $0x68] sm:$0xff] %v374
            %v376 = vld [vmem:[%s346 + $0x70] sm:$0xff]
            %377 = vst [vmem:[%s347 + $0x70] sm:$0xff] %v376
            %v378 = vld [vmem:[%s346 + $0x78] sm:$0xff]
            %379 = vst [vmem:[%s347 + $0x78] sm:$0xff] %v378
            %v380 = vld [vmem:[%s346 + $0x80] sm:$0xff]
            %381 = vst [vmem:[%s347 + $0x80] sm:$0xff] %v380
            %v382 = vld [vmem:[%s346 + $0x88] sm:$0xff]
            %383 = vst [vmem:[%s347 + $0x88] sm:$0xff] %v382
            %v384 = vld [vmem:[%s346 + $0x90] sm:$0xff]
            %385 = vst [vmem:[%s347 + $0x90] sm:$0xff] %v384
            %v386 = vld [vmem:[%s346 + $0x98] sm:$0xff]
            %387 = vst [vmem:[%s347 + $0x98] sm:$0xff] %v386
            %v388 = vld [vmem:[%s346 + $0xa0] sm:$0xff]
            %389 = vst [vmem:[%s347 + $0xa0] sm:$0xff] %v388
            %v390 = vld [vmem:[%s346 + $0xa8] sm:$0xff]
            %391 = vst [vmem:[%s347 + $0xa8] sm:$0xff] %v390
            %v392 = vld [vmem:[%s346 + $0xb0] sm:$0xff]
            %393 = vst [vmem:[%s347 + $0xb0] sm:$0xff] %v392
            %v394 = vld [vmem:[%s346 + $0xb8] sm:$0xff]
            %395 = vst [vmem:[%s347 + $0xb8] sm:$0xff] %v394
            %v396 = vld [vmem:[%s346 + $0xc0] sm:$0xff]
            %397 = vst [vmem:[%s347 + $0xc0] sm:$0xff] %v396
            %v398 = vld [vmem:[%s346 + $0xc8] sm:$0xff]
            %399 = vst [vmem:[%s347 + $0xc8] sm:$0xff] %v398
            %v400 = vld [vmem:[%s346 + $0xd0] sm:$0xff]
            %401 = vst [vmem:[%s347 + $0xd0] sm:$0xff] %v400
            %v402 = vld [vmem:[%s346 + $0xd8] sm:$0xff]
            %403 = vst [vmem:[%s347 + $0xd8] sm:$0xff] %v402
            %v404 = vld [vmem:[%s346 + $0xe0] sm:$0xff]
            %405 = vst [vmem:[%s347 + $0xe0] sm:$0xff] %v404
            %v406 = vld [vmem:[%s346 + $0xe8] sm:$0xff]
            %407 = vst [vmem:[%s347 + $0xe8] sm:$0xff] %v406
            %v408 = vld [vmem:[%s346 + $0xf0] sm:$0xff]
            %409 = vst [vmem:[%s347 + $0xf0] sm:$0xff] %v408
            %v410 = vld [vmem:[%s346 + $0xf8] sm:$0xff]
            %411 = vst [vmem:[%s347 + $0xf8] sm:$0xff] %v410
            %v412 = vld [vmem:[%s346 + $0x100] sm:$0xff]
            %413 = vst [vmem:[%s347 + $0x100] sm:$0xff] %v412
            %v414 = vld [vmem:[%s346 + $0x108] sm:$0xff]
            %415 = vst [vmem:[%s347 + $0x108] sm:$0xff] %v414
            %v416 = vld [vmem:[%s346 + $0x110] sm:$0xff]
            %417 = vst [vmem:[%s347 + $0x110] sm:$0xff] %v416
            %v418 = vld [vmem:[%s346 + $0x118] sm:$0xff]
            %419 = vst [vmem:[%s347 + $0x118] sm:$0xff] %v418
            %v420 = vld [vmem:[%s346 + $0x120] sm:$0xff]
            %421 = vst [vmem:[%s347 + $0x120] sm:$0xff] %v420
            %v422 = vld [vmem:[%s346 + $0x128] sm:$0xff]
            %423 = vst [vmem:[%s347 + $0x128] sm:$0xff] %v422
            %v424 = vld [vmem:[%s346 + $0x130] sm:$0xff]
            %425 = vst [vmem:[%s347 + $0x130] sm:$0xff] %v424
            %v426 = vld [vmem:[%s346 + $0x138] sm:$0xff]
            %427 = vst [vmem:[%s347 + $0x138] sm:$0xff] %v426
            %v428 = vld [vmem:[%s346 + $0x140] sm:$0xff]
            %429 = vst [vmem:[%s347 + $0x140] sm:$0xff] %v428
            %v430 = vld [vmem:[%s346 + $0x148] sm:$0xff]
            %431 = vst [vmem:[%s347 + $0x148] sm:$0xff] %v430
            %v432 = vld [vmem:[%s346 + $0x150] sm:$0xff]
            %433 = vst [vmem:[%s347 + $0x150] sm:$0xff] %v432
            %v434 = vld [vmem:[%s346 + $0x158] sm:$0xff]
            %435 = vst [vmem:[%s347 + $0x158] sm:$0xff] %v434
            %v436 = vld [vmem:[%s346 + $0x160] sm:$0xff]
            %437 = vst [vmem:[%s347 + $0x160] sm:$0xff] %v436
            %v438 = vld [vmem:[%s346 + $0x168] sm:$0xff]
            %439 = vst [vmem:[%s347 + $0x168] sm:$0xff] %v438
            %v440 = vld [vmem:[%s346 + $0x170] sm:$0xff]
            %441 = vst [vmem:[%s347 + $0x170] sm:$0xff] %v440
            %v442 = vld [vmem:[%s346 + $0x178] sm:$0xff]
            %443 = vst [vmem:[%s347 + $0x178] sm:$0xff] %v442
            %v444 = vld [vmem:[%s346 + $0x180] sm:$0xff]
            %445 = vst [vmem:[%s347 + $0x180] sm:$0xff] %v444
            %v446 = vld [vmem:[%s346 + $0x188] sm:$0xff]
            %447 = vst [vmem:[%s347 + $0x188] sm:$0xff] %v446
            %v448 = vld [vmem:[%s346 + $0x190] sm:$0xff]
            %449 = vst [vmem:[%s347 + $0x190] sm:$0xff] %v448
            %v450 = vld [vmem:[%s346 + $0x198] sm:$0xff]
            %451 = vst [vmem:[%s347 + $0x198] sm:$0xff] %v450
            %v452 = vld [vmem:[%s346 + $0x1a0] sm:$0xff]
            %453 = vst [vmem:[%s347 + $0x1a0] sm:$0xff] %v452
            %v454 = vld [vmem:[%s346 + $0x1a8] sm:$0xff]
            %455 = vst [vmem:[%s347 + $0x1a8] sm:$0xff] %v454
            %v456 = vld [vmem:[%s346 + $0x1b0] sm:$0xff]
            %457 = vst [vmem:[%s347 + $0x1b0] sm:$0xff] %v456
            %v458 = vld [vmem:[%s346 + $0x1b8] sm:$0xff]
            %459 = vst [vmem:[%s347 + $0x1b8] sm:$0xff] %v458
            %v460 = vld [vmem:[%s346 + $0x1c0] sm:$0xff]
            %461 = vst [vmem:[%s347 + $0x1c0] sm:$0xff] %v460
            %v462 = vld [vmem:[%s346 + $0x1c8] sm:$0xff]
            %463 = vst [vmem:[%s347 + $0x1c8] sm:$0xff] %v462
            %v464 = vld [vmem:[%s346 + $0x1d0] sm:$0xff]
            %465 = vst [vmem:[%s347 + $0x1d0] sm:$0xff] %v464
            %v466 = vld [vmem:[%s346 + $0x1d8] sm:$0xff]
            %467 = vst [vmem:[%s347 + $0x1d8] sm:$0xff] %v466
            %v468 = vld [vmem:[%s346 + $0x1e0] sm:$0xff]
            %469 = vst [vmem:[%s347 + $0x1e0] sm:$0xff] %v468
            %v470 = vld [vmem:[%s346 + $0x1e8] sm:$0xff]
            %471 = vst [vmem:[%s347 + $0x1e8] sm:$0xff] %v470
            %v472 = vld [vmem:[%s346 + $0x1f0] sm:$0xff]
            %473 = vst [vmem:[%s347 + $0x1f0] sm:$0xff] %v472
            %v474 = vld [vmem:[%s346 + $0x1f8] sm:$0xff]
            %475 = vst [vmem:[%s347 + $0x1f8] sm:$0xff] %v474
          $region76: #{two_layer_scale2_forward.1} parent=70 // loop_footer
            %s345 = sadd.s32 1, %s341
          $region77: #{two_layer_scale2_forward.1} parent=70 // loop_footer_branch
            %340 = sbr.rel target = $region73
          $region78: #{two_layer_scale2_forward.1} parent=70 // loop_exit
            _
        $region71: #{two_layer_scale2_forward.1} parent=47 // pred_fallthru
          _
        // Predicated region
        $region79: #{two_layer_scale2_forward.1} parent=47 // pred_check
          _
        $region80: #{two_layer_scale2_forward.1} parent=47 // pred_check_branch
          %477 = sbr.rel target = $region82
        $region81: #{two_layer_scale2_forward.1} parent=47 // pred_region
          _
        $region82: #{two_layer_scale2_forward.1} parent=47 // pred_fallthru
          _
        // Predicated region
        $region83: #{two_layer_scale2_forward.1} parent=47 // pred_check
          _
        $region84: #{two_layer_scale2_forward.1} parent=47 // pred_check_branch
          %480 = sbr.rel (0) target = $region86
        $region85: #{two_layer_scale2_forward.1} parent=47 // pred_region
          %481 = vsyncadd %s337, 8192
        $region86: #{two_layer_scale2_forward.1} parent=47 // pred_fallthru
          _
        %s482 = scalar_lea.sflag [#allocation5], 2
        // Predicated region
        $region87: #{two_layer_scale2_forward.1} parent=47 // pred_check
          _
        $region88: #{two_layer_scale2_forward.1} parent=47 // pred_check_branch
          %484 = sbr.rel target = $region90
        $region89: #{two_layer_scale2_forward.1} parent=47 // pred_region
          %485 = sst [smem:[#allocation14]] [#allocation13]
          %486 = sst [smem:[#allocation15]] [#allocation12]
        $region90: #{two_layer_scale2_forward.1} parent=47 // pred_fallthru
          _
        %488 = shalt.err (0)
        %s490 = sshll.u32 %s4, 4
        %s491 = int_to_ptr.hbm [resolvable:$true] %s490
        %s492 = sshll.u32 [#allocation4], 4
        %s493 = int_to_ptr.vmem [resolvable:$true] %s492
        %495 = dma.hbm_to_vmem [thread:$0]  %s491, 16384, %s493, %s482
        %vm496 = vcmask 523264
        %497 = vst.msk [vmem:[#allocation6] sm:$0xff] %vm496, 0.0
        %498 = vst.msk [vmem:[#allocation6 + $0x8] sm:$0xff] %vm496, 0.0
        %499 = vst.msk [vmem:[#allocation6 + $0x10] sm:$0xff] %vm496, 0.0
        %500 = vst.msk [vmem:[#allocation6 + $0x18] sm:$0xff] %vm496, 0.0
        %vm501 = vcmask 517120
        %502 = vst.msk [vmem:[#allocation6 + $0x20] sm:$0x3] %vm501, 0.0
        %503 = vst.msk [vmem:[#allocation7] sm:$0xff] %vm496, 0.0
        %504 = vst.msk [vmem:[#allocation7 + $0x8] sm:$0xff] %vm496, 0.0
        %505 = vst.msk [vmem:[#allocation7 + $0x10] sm:$0x3] %vm501, 0.0
        %506 = vst [vmem:[#allocation8] sm:$0xff] 0.0
        %507 = vst [vmem:[#allocation8 + $0x8] sm:$0x3] 0.0
        %508 = vst [vmem:[#allocation9] sm:$0xf] 0.0
      $region48: #{two_layer_scale2_forward.1} parent=43 // pred_fallthru
        _
      %v509 = vld [vmem:[%s248] sm:$0xff]
      %v510 = vld [vmem:[%s248 + $0x8] sm:$0xff]
      %v511 = vld [vmem:[%s248 + $0x10] sm:$0xff]
      %v512 = vld [vmem:[%s248 + $0x18] sm:$0xff]
      %v513 = vld [vmem:[%s1] sm:$0xff]
      %v514 = vld [vmem:[%s1 + $0x8] sm:$0xff]
      %v515 = vld [vmem:[%s1 + $0x10] sm:$0xff]
      %v516 = vld [vmem:[%s1 + $0x18] sm:$0xff]
      %v517 = vld [vmem:[%s1 + $0x20] sm:$0xff]
      %v518 = vld [vmem:[%s1 + $0x28] sm:$0xff]
      %v519 = vld [vmem:[%s1 + $0x30] sm:$0xff]
      %v520 = vld [vmem:[%s1 + $0x38] sm:$0xff]
      %v521 = vld [vmem:[%s1 + $0x40] sm:$0xff]
      %v522 = vld [vmem:[%s1 + $0x48] sm:$0xff]
      %v523 = vld [vmem:[%s1 + $0x50] sm:$0xff]
      %v524 = vld [vmem:[%s1 + $0x58] sm:$0xff]
      %v525 = vld [vmem:[%s1 + $0x60] sm:$0xff]
      %v526 = vld [vmem:[%s1 + $0x68] sm:$0xff]
      %v527 = vld [vmem:[%s1 + $0x70] sm:$0xff]
      %v528 = vld [vmem:[%s1 + $0x78] sm:$0xff]
      %v529 = vld [vmem:[%s1 + $0x80] sm:$0xff]
      %v530 = vld [vmem:[%s1 + $0x88] sm:$0xff]
      %v531 = vld [vmem:[%s1 + $0x90] sm:$0xff]
      %v532 = vld [vmem:[%s1 + $0x98] sm:$0xff]
      %v533 = vld [vmem:[%s1 + $0xa0] sm:$0xff]
      %v534 = vld [vmem:[%s1 + $0xa8] sm:$0xff]
      %v535 = vld [vmem:[%s1 + $0xb0] sm:$0xff]
      %v536 = vld [vmem:[%s1 + $0xb8] sm:$0xff]
      %v537 = vld [vmem:[%s1 + $0xc0] sm:$0xff]
      %v538 = vld [vmem:[%s1 + $0xc8] sm:$0xff]
      %v539 = vld [vmem:[%s1 + $0xd0] sm:$0xff]
      %v540 = vld [vmem:[%s1 + $0xd8] sm:$0xff]
      %v541 = vld [vmem:[%s1 + $0xe0] sm:$0xff]
      %v542 = vld [vmem:[%s1 + $0xe8] sm:$0xff]
      %v543 = vld [vmem:[%s1 + $0xf0] sm:$0xff]
      %v544 = vld [vmem:[%s1 + $0xf8] sm:$0xff]
      %v545 = vld [vmem:[%s5] sm:$0x1]
      %vm546 = vcmask 523264
      %547 = vst.msk [vmem:[#allocation6 + $0x1] sm:$0xff] %vm546, %v509
      %548 = vst.msk [vmem:[#allocation6 + $0x9] sm:$0xff] %vm546, %v510
      %549 = vst.msk [vmem:[#allocation6 + $0x11] sm:$0xff] %vm546, %v511
      %550 = vst.msk [vmem:[#allocation6 + $0x19] sm:$0xff] %vm546, %v512
      %v551 = vld [vmem:[#allocation6] ss:$2 sm:$0xff]
      %s552 = scalar_lea.vmem [#allocation6], 16
      %v553 = vld [vmem:[%s552] ss:$2 sm:$0xff]
      %s554 = scalar_lea.vmem [#allocation6], 1
      %v555 = vld [vmem:[%s554] ss:$2 sm:$0xff]
      %s556 = scalar_lea.vmem [#allocation6], 17
      %v557 = vld [vmem:[%s556] ss:$2 sm:$0xff]
      %s558 = scalar_lea.vmem [#allocation6], 2
      %v559 = vld [vmem:[%s558] ss:$2 sm:$0xff]
      %s560 = scalar_lea.vmem [#allocation6], 18
      %v561 = vld [vmem:[%s560] ss:$2 sm:$0xff]
      %s562 = scalar_lea.vmem [#allocation6], 3
      %v563 = vld [vmem:[%s562] ss:$2 sm:$0xff]
      %s564 = scalar_lea.vmem [#allocation6], 19
      %v565 = vld [vmem:[%s564] ss:$2 sm:$0xff]
      %568 = vrot.lane.b32.xlu0 %v555, 64
      %v569 = vpop.permute.xlu0 %568
      %570 = vrot.lane.b32.xlu0 %v557, 64
      %v571 = vpop.permute.xlu0 %570
      %576 = vrot.lane.b32.xlu0 %v563, 64
      %v577 = vpop.permute.xlu0 %576
      %578 = vrot.lane.b32.xlu0 %v565, 64
      %v579 = vpop.permute.xlu0 %578
      %v582 = vsel %vm546, %v551, %v569
      %v583 = vsel %vm546, %v553, %v571
      %v584 = vsel %vm546, %v559, %v577
      %v585 = vsel %vm546, %v561, %v579
      %v587 = vperm.slane %v545, 0
      %589 = vmatpush.msra.mxu0 %v528
      %590 = vmatpush.msra.mxu0 %v527
      %591 = vmatpush.msra.mxu0 %v526
      %592 = vmatpush.msra.mxu0 %v525
      %593 = vmatpush.msra.mxu0 %v524
      %594 = vmatpush.msra.mxu0 %v523
      %595 = vmatpush.msra.mxu0 %v522
      %596 = vmatpush.msra.mxu0 %v521
      %597 = vmatpush.msra.mxu0 %v520
      %598 = vmatpush.msra.mxu0 %v519
      %599 = vmatpush.msra.mxu0 %v518
      %600 = vmatpush.msra.mxu0 %v517
      %601 = vmatpush.msra.mxu0 %v516
      %602 = vmatpush.msra.mxu0 %v515
      %603 = vmatpush.msra.mxu0 %v514
      %604 = vmatpush.msra.mxu0 %v513
      %605 = vmatmul.f32.gmra.mxu0 %v582
      %v606 = vpop.f32.mrf.mxu0
      %v607 = vadd.f32 %v587, %v606
      %608 = vmatmul.f32.gmra.mxu0 %v583
      %v609 = vpop.f32.mrf.mxu0
      %v610 = vadd.f32 %v587, %v609
      %611 = vdwg.mxu0
      %612 = vmatpush.msra.mxu0 %v544
      %613 = vmatpush.msra.mxu0 %v543
      %614 = vmatpush.msra.mxu0 %v542
      %615 = vmatpush.msra.mxu0 %v541
      %616 = vmatpush.msra.mxu0 %v540
      %617 = vmatpush.msra.mxu0 %v539
      %618 = vmatpush.msra.mxu0 %v538
      %619 = vmatpush.msra.mxu0 %v537
      %620 = vmatpush.msra.mxu0 %v536
      %621 = vmatpush.msra.mxu0 %v535
      %622 = vmatpush.msra.mxu0 %v534
      %623 = vmatpush.msra.mxu0 %v533
      %624 = vmatpush.msra.mxu0 %v532
      %625 = vmatpush.msra.mxu0 %v531
      %626 = vmatpush.msra.mxu0 %v530
      %627 = vmatpush.msra.mxu0 %v529
      %628 = vmatmul.f32.gmra.mxu0 %v584
      %v629 = vpop.f32.mrf.mxu0
      %v630 = vadd.f32 %v607, %v629
      %631 = vmatmul.f32.gmra.mxu0 %v585
      %v632 = vpop.f32.mrf.mxu0
      %v633 = vadd.f32 %v610, %v632
      %634 = vdwg.mxu0
      %vm635 = vcmp.ge.f32.partialorder %v630, 0.0
      %vm636 = vcmp.ge.f32.partialorder %v633, 0.0
      %v637 = vmul.f32 %v630, 0.2
      %v638 = vmul.f32 %v633, 0.2
      %v639 = vsel %vm635, %v630, %v637
      %v640 = vsel %vm636, %v633, %v638
      // Predicated region
      $region91: #{two_layer_scale2_forward.1} parent=43 // pred_check
        %p641 = pneg %p253
      $region92: #{two_layer_scale2_forward.1} parent=43 // pred_check_branch
        %643 = sbr.rel (%p641) target = $region94
      $region93: #{two_layer_scale2_forward.1} parent=43 // pred_region
        %s644 = smul.u32 256, 1
        %s645 = sshll.u32 %s644, 4
        %646 = dma.done [#allocation5], %s645
      $region94: #{two_layer_scale2_forward.1} parent=43 // pred_fallthru
        _
      %v647 = vld [vmem:[#allocation2] sm:$0xff]
      %v648 = vld [vmem:[#allocation2 + $0x8] sm:$0xff]
      %v649 = vld [vmem:[#allocation2 + $0x10] sm:$0xff]
      %v650 = vld [vmem:[#allocation2 + $0x18] sm:$0xff]
      %v651 = vld [vmem:[#allocation2 + $0x20] sm:$0xff]
      %v652 = vld [vmem:[#allocation2 + $0x28] sm:$0xff]
      %v653 = vld [vmem:[#allocation2 + $0x30] sm:$0xff]
      %v654 = vld [vmem:[#allocation2 + $0x38] sm:$0xff]
      %v655 = vld [vmem:[#allocation2 + $0x40] sm:$0xff]
      %v656 = vld [vmem:[#allocation2 + $0x48] sm:$0xff]
      %v657 = vld [vmem:[#allocation2 + $0x50] sm:$0xff]
      %v658 = vld [vmem:[#allocation2 + $0x58] sm:$0xff]
      %v659 = vld [vmem:[#allocation2 + $0x60] sm:$0xff]
      %v660 = vld [vmem:[#allocation2 + $0x68] sm:$0xff]
      %v661 = vld [vmem:[#allocation2 + $0x70] sm:$0xff]
      %v662 = vld [vmem:[#allocation2 + $0x78] sm:$0xff]
      %v663 = vld [vmem:[#allocation2 + $0x80] sm:$0xff]
      %v664 = vld [vmem:[#allocation2 + $0x88] sm:$0xff]
      %v665 = vld [vmem:[#allocation2 + $0x90] sm:$0xff]
      %v666 = vld [vmem:[#allocation2 + $0x98] sm:$0xff]
      %v667 = vld [vmem:[#allocation2 + $0xa0] sm:$0xff]
      %v668 = vld [vmem:[#allocation2 + $0xa8] sm:$0xff]
      %v669 = vld [vmem:[#allocation2 + $0xb0] sm:$0xff]
      %v670 = vld [vmem:[#allocation2 + $0xb8] sm:$0xff]
      %v671 = vld [vmem:[#allocation2 + $0xc0] sm:$0xff]
      %v672 = vld [vmem:[#allocation2 + $0xc8] sm:$0xff]
      %v673 = vld [vmem:[#allocation2 + $0xd0] sm:$0xff]
      %v674 = vld [vmem:[#allocation2 + $0xd8] sm:$0xff]
      %v675 = vld [vmem:[#allocation2 + $0xe0] sm:$0xff]
      %v676 = vld [vmem:[#allocation2 + $0xe8] sm:$0xff]
      %v677 = vld [vmem:[#allocation2 + $0xf0] sm:$0xff]
      %v678 = vld [vmem:[#allocation2 + $0xf8] sm:$0xff]
      %v679 = vld [vmem:[%s6] sm:$0x1]
      %680 = vst.msk [vmem:[#allocation7 + $0x1] sm:$0xff] %vm546, %v639
      %681 = vst.msk [vmem:[#allocation7 + $0x9] sm:$0xff] %vm546, %v640
      %v682 = vld [vmem:[#allocation7] ss:$2 sm:$0xff]
      %s683 = scalar_lea.vmem [#allocation7], 1
      %v684 = vld [vmem:[%s683] ss:$2 sm:$0xff]
      %s685 = scalar_lea.vmem [#allocation7], 2
      %v686 = vld [vmem:[%s685] ss:$2 sm:$0xff]
      %s687 = scalar_lea.vmem [#allocation7], 3
      %v688 = vld [vmem:[%s687] ss:$2 sm:$0xff]
      %690 = vrot.lane.b32.xlu0 %v684, 64
      %v691 = vpop.permute.xlu0 %690
      %694 = vrot.lane.b32.xlu0 %v688, 64
      %v695 = vpop.permute.xlu0 %694
      %v697 = vsel %vm546, %v682, %v691
      %v698 = vsel %vm546, %v686, %v695
      %v700 = vperm.slane %v679, 0
      %702 = vmatpush.msra.mxu0 %v662
      %703 = vmatpush.msra.mxu0 %v661
      %704 = vmatpush.msra.mxu0 %v660
      %705 = vmatpush.msra.mxu0 %v659
      %706 = vmatpush.msra.mxu0 %v658
      %707 = vmatpush.msra.mxu0 %v657
      %708 = vmatpush.msra.mxu0 %v656
      %709 = vmatpush.msra.mxu0 %v655
      %710 = vmatpush.msra.mxu0 %v654
      %711 = vmatpush.msra.mxu0 %v653
      %712 = vmatpush.msra.mxu0 %v652
      %713 = vmatpush.msra.mxu0 %v651
      %714 = vmatpush.msra.mxu0 %v650
      %715 = vmatpush.msra.mxu0 %v649
      %716 = vmatpush.msra.mxu0 %v648
      %717 = vmatpush.msra.mxu0 %v647
      %718 = vmatmul.f32.gmra.mxu0 %v697
      %v719 = vpop.f32.mrf.mxu0
      %v720 = vadd.f32 %v700, %v719
      %721 = vdwg.mxu0
      %722 = vmatpush.msra.mxu0 %v678
      %723 = vmatpush.msra.mxu0 %v677
      %724 = vmatpush.msra.mxu0 %v676
      %725 = vmatpush.msra.mxu0 %v675
      %726 = vmatpush.msra.mxu0 %v674
      %727 = vmatpush.msra.mxu0 %v673
      %728 = vmatpush.msra.mxu0 %v672
      %729 = vmatpush.msra.mxu0 %v671
      %730 = vmatpush.msra.mxu0 %v670
      %731 = vmatpush.msra.mxu0 %v669
      %732 = vmatpush.msra.mxu0 %v668
      %733 = vmatpush.msra.mxu0 %v667
      %734 = vmatpush.msra.mxu0 %v666
      %735 = vmatpush.msra.mxu0 %v665
      %736 = vmatpush.msra.mxu0 %v664
      %737 = vmatpush.msra.mxu0 %v663
      %738 = vmatmul.f32.gmra.mxu0 %v698
      %v739 = vpop.f32.mrf.mxu0
      %v740 = vadd.f32 %v720, %v739
      %741 = vdwg.mxu0
      %vm742 = vcmp.ge.f32.partialorder %v740, 0.0
      %v743 = vmul.f32 %v740, 0.2
      %v744 = vsel %vm742, %v740, %v743
      // Predicated region
      $region95: #{two_layer_scale2_forward.1} parent=43 // pred_check
        %p745 = pneg %p253
      $region96: #{two_layer_scale2_forward.1} parent=43 // pred_check_branch
        %747 = sbr.rel (%p745) target = $region98
      $region97: #{two_layer_scale2_forward.1} parent=43 // pred_region
        %s748 = scalar_lea.sflag [#allocation5], 1
        %s749 = smul.u32 512, 1
        %s750 = sshll.u32 %s749, 4
        %751 = dma.done %s748, %s750
      $region98: #{two_layer_scale2_forward.1} parent=43 // pred_fallthru
        _
      %v752 = vld [vmem:[#allocation3] sm:$0xff]
      %v753 = vld [vmem:[#allocation3 + $0x8] sm:$0xff]
      %v754 = vld [vmem:[#allocation3 + $0x10] sm:$0xff]
      %v755 = vld [vmem:[#allocation3 + $0x18] sm:$0xff]
      %v756 = vld [vmem:[#allocation3 + $0x20] sm:$0xff]
      %v757 = vld [vmem:[#allocation3 + $0x28] sm:$0xff]
      %v758 = vld [vmem:[#allocation3 + $0x30] sm:$0xff]
      %v759 = vld [vmem:[#allocation3 + $0x38] sm:$0xff]
      %v760 = vld [vmem:[#allocation3 + $0x40] sm:$0xff]
      %v761 = vld [vmem:[#allocation3 + $0x48] sm:$0xff]
      %v762 = vld [vmem:[#allocation3 + $0x50] sm:$0xff]
      %v763 = vld [vmem:[#allocation3 + $0x58] sm:$0xff]
      %v764 = vld [vmem:[#allocation3 + $0x60] sm:$0xff]
      %v765 = vld [vmem:[#allocation3 + $0x68] sm:$0xff]
      %v766 = vld [vmem:[#allocation3 + $0x70] sm:$0xff]
      %v767 = vld [vmem:[#allocation3 + $0x78] sm:$0xff]
      %v768 = vld [vmem:[#allocation3 + $0x80] sm:$0xff]
      %v769 = vld [vmem:[#allocation3 + $0x88] sm:$0xff]
      %v770 = vld [vmem:[#allocation3 + $0x90] sm:$0xff]
      %v771 = vld [vmem:[#allocation3 + $0x98] sm:$0xff]
      %v772 = vld [vmem:[#allocation3 + $0xa0] sm:$0xff]
      %v773 = vld [vmem:[#allocation3 + $0xa8] sm:$0xff]
      %v774 = vld [vmem:[#allocation3 + $0xb0] sm:$0xff]
      %v775 = vld [vmem:[#allocation3 + $0xb8] sm:$0xff]
      %v776 = vld [vmem:[#allocation3 + $0xc0] sm:$0xff]
      %v777 = vld [vmem:[#allocation3 + $0xc8] sm:$0xff]
      %v778 = vld [vmem:[#allocation3 + $0xd0] sm:$0xff]
      %v779 = vld [vmem:[#allocation3 + $0xd8] sm:$0xff]
      %v780 = vld [vmem:[#allocation3 + $0xe0] sm:$0xff]
      %v781 = vld [vmem:[#allocation3 + $0xe8] sm:$0xff]
      %v782 = vld [vmem:[#allocation3 + $0xf0] sm:$0xff]
      %v783 = vld [vmem:[#allocation3 + $0xf8] sm:$0xff]
      %v784 = vld [vmem:[#allocation3 + $0x100] sm:$0xff]
      %v785 = vld [vmem:[#allocation3 + $0x108] sm:$0xff]
      %v786 = vld [vmem:[#allocation3 + $0x110] sm:$0xff]
      %v787 = vld [vmem:[#allocation3 + $0x118] sm:$0xff]
      %v788 = vld [vmem:[#allocation3 + $0x120] sm:$0xff]
      %v789 = vld [vmem:[#allocation3 + $0x128] sm:$0xff]
      %v790 = vld [vmem:[#allocation3 + $0x130] sm:$0xff]
      %v791 = vld [vmem:[#allocation3 + $0x138] sm:$0xff]
      %v792 = vld [vmem:[#allocation3 + $0x140] sm:$0xff]
      %v793 = vld [vmem:[#allocation3 + $0x148] sm:$0xff]
      %v794 = vld [vmem:[#allocation3 + $0x150] sm:$0xff]
      %v795 = vld [vmem:[#allocation3 + $0x158] sm:$0xff]
      %v796 = vld [vmem:[#allocation3 + $0x160] sm:$0xff]
      %v797 = vld [vmem:[#allocation3 + $0x168] sm:$0xff]
      %v798 = vld [vmem:[#allocation3 + $0x170] sm:$0xff]
      %v799 = vld [vmem:[#allocation3 + $0x178] sm:$0xff]
      %v800 = vld [vmem:[#allocation3 + $0x180] sm:$0xff]
      %v801 = vld [vmem:[#allocation3 + $0x188] sm:$0xff]
      %v802 = vld [vmem:[#allocation3 + $0x190] sm:$0xff]
      %v803 = vld [vmem:[#allocation3 + $0x198] sm:$0xff]
      %v804 = vld [vmem:[#allocation3 + $0x1a0] sm:$0xff]
      %v805 = vld [vmem:[#allocation3 + $0x1a8] sm:$0xff]
      %v806 = vld [vmem:[#allocation3 + $0x1b0] sm:$0xff]
      %v807 = vld [vmem:[#allocation3 + $0x1b8] sm:$0xff]
      %v808 = vld [vmem:[#allocation3 + $0x1c0] sm:$0xff]
      %v809 = vld [vmem:[#allocation3 + $0x1c8] sm:$0xff]
      %v810 = vld [vmem:[#allocation3 + $0x1d0] sm:$0xff]
      %v811 = vld [vmem:[#allocation3 + $0x1d8] sm:$0xff]
      %v812 = vld [vmem:[#allocation3 + $0x1e0] sm:$0xff]
      %v813 = vld [vmem:[#allocation3 + $0x1e8] sm:$0xff]
      %v814 = vld [vmem:[#allocation3 + $0x1f0] sm:$0xff]
      %v815 = vld [vmem:[#allocation3 + $0x1f8] sm:$0xff]
      %v816 = vld [vmem:[%s7] sm:$0x1]
      %817 = vst [vmem:[#allocation8 + $0x1] sm:$0xff] %v744
      %v818 = vld [vmem:[#allocation8] ss:$2 sm:$0xf]
      %s819 = scalar_lea.vmem [#allocation8], 1
      %v820 = vld [vmem:[%s819] ss:$2 sm:$0xf]
      %s821 = scalar_lea.vmem [#allocation8], 2
      %v822 = vld [vmem:[%s821] ss:$2 sm:$0xf]
      %s823 = scalar_lea.vmem [#allocation8], 3
      %v824 = vld [vmem:[%s823] ss:$2 sm:$0xf]
      %v826 = vperm.slane %v816, 0
      %828 = vmatpush.msra.mxu0 %v767
      %829 = vmatpush.msra.mxu0 %v766
      %830 = vmatpush.msra.mxu0 %v765
      %831 = vmatpush.msra.mxu0 %v764
      %832 = vmatpush.msra.mxu0 %v763
      %833 = vmatpush.msra.mxu0 %v762
      %834 = vmatpush.msra.mxu0 %v761
      %835 = vmatpush.msra.mxu0 %v760
      %836 = vmatpush.msra.mxu0 %v759
      %837 = vmatpush.msra.mxu0 %v758
      %838 = vmatpush.msra.mxu0 %v757
      %839 = vmatpush.msra.mxu0 %v756
      %840 = vmatpush.msra.mxu0 %v755
      %841 = vmatpush.msra.mxu0 %v754
      %842 = vmatpush.msra.mxu0 %v753
      %843 = vmatpush.msra.mxu0 %v752
      %844 = vmatmul.f32.gmra.mxu0 %v818
      %v845 = vpop.f32.mrf.mxu0
      %v846 = vadd.f32 %v826, %v845
      %847 = vdwg.mxu0
      %848 = vmatpush.msra.mxu0 %v783
      %849 = vmatpush.msra.mxu0 %v782
      %850 = vmatpush.msra.mxu0 %v781
      %851 = vmatpush.msra.mxu0 %v780
      %852 = vmatpush.msra.mxu0 %v779
      %853 = vmatpush.msra.mxu0 %v778
      %854 = vmatpush.msra.mxu0 %v777
      %855 = vmatpush.msra.mxu0 %v776
      %856 = vmatpush.msra.mxu0 %v775
      %857 = vmatpush.msra.mxu0 %v774
      %858 = vmatpush.msra.mxu0 %v773
      %859 = vmatpush.msra.mxu0 %v772
      %860 = vmatpush.msra.mxu0 %v771
      %861 = vmatpush.msra.mxu0 %v770
      %862 = vmatpush.msra.mxu0 %v769
      %863 = vmatpush.msra.mxu0 %v768
      %864 = vmatmul.f32.gmra.mxu0 %v820
      %v865 = vpop.f32.mrf.mxu0
      %v866 = vadd.f32 %v846, %v865
      %867 = vdwg.mxu0
      %868 = vmatpush.msra.mxu0 %v799
      %869 = vmatpush.msra.mxu0 %v798
      %870 = vmatpush.msra.mxu0 %v797
      %871 = vmatpush.msra.mxu0 %v796
      %872 = vmatpush.msra.mxu0 %v795
      %873 = vmatpush.msra.mxu0 %v794
      %874 = vmatpush.msra.mxu0 %v793
      %875 = vmatpush.msra.mxu0 %v792
      %876 = vmatpush.msra.mxu0 %v791
      %877 = vmatpush.msra.mxu0 %v790
      %878 = vmatpush.msra.mxu0 %v789
      %879 = vmatpush.msra.mxu0 %v788
      %880 = vmatpush.msra.mxu0 %v787
      %881 = vmatpush.msra.mxu0 %v786
      %882 = vmatpush.msra.mxu0 %v785
      %883 = vmatpush.msra.mxu0 %v784
      %884 = vmatmul.f32.gmra.mxu0 %v822
      %v885 = vpop.f32.mrf.mxu0
      %v886 = vadd.f32 %v866, %v885
      %887 = vdwg.mxu0
      %888 = vmatpush.msra.mxu0 %v815
      %889 = vmatpush.msra.mxu0 %v814
      %890 = vmatpush.msra.mxu0 %v813
      %891 = vmatpush.msra.mxu0 %v812
      %892 = vmatpush.msra.mxu0 %v811
      %893 = vmatpush.msra.mxu0 %v810
      %894 = vmatpush.msra.mxu0 %v809
      %895 = vmatpush.msra.mxu0 %v808
      %896 = vmatpush.msra.mxu0 %v807
      %897 = vmatpush.msra.mxu0 %v806
      %898 = vmatpush.msra.mxu0 %v805
      %899 = vmatpush.msra.mxu0 %v804
      %900 = vmatpush.msra.mxu0 %v803
      %901 = vmatpush.msra.mxu0 %v802
      %902 = vmatpush.msra.mxu0 %v801
      %903 = vmatpush.msra.mxu0 %v800
      %904 = vmatmul.f32.gmra.mxu0 %v824
      %v905 = vpop.f32.mrf.mxu0
      %v906 = vadd.f32 %v886, %v905
      %907 = vdwg.mxu0
      %vm908 = vcmp.ge.f32.partialorder %v906, 0.0
      %v909 = vmul.f32 %v906, 0.2
      %v910 = vsel %vm908, %v906, %v909
      // Predicated region
      $region99: #{two_layer_scale2_forward.1} parent=43 // pred_check
        %p911 = pneg %p253
      $region100: #{two_layer_scale2_forward.1} parent=43 // pred_check_branch
        %913 = sbr.rel (%p911) target = $region102
      $region101: #{two_layer_scale2_forward.1} parent=43 // pred_region
        %s914 = scalar_lea.sflag [#allocation5], 2
        %s915 = smul.u32 8, 64
        %s916 = smul.u32 %s915, 2
        %s917 = sshll.u32 %s916, 4
        %918 = dma.done %s914, %s917
      $region102: #{two_layer_scale2_forward.1} parent=43 // pred_fallthru
        _
      %v919 = vld [vmem:[#allocation4] sm:$0xff]
      %v920 = vld [vmem:[#allocation4 + $0x8] sm:$0xff]
      %v921 = vld [vmem:[#allocation4 + $0x10] sm:$0xff]
      %v922 = vld [vmem:[#allocation4 + $0x18] sm:$0xff]
      %v923 = vld [vmem:[#allocation4 + $0x20] sm:$0xff]
      %v924 = vld [vmem:[#allocation4 + $0x28] sm:$0xff]
      %v925 = vld [vmem:[#allocation4 + $0x30] sm:$0xff]
      %v926 = vld [vmem:[#allocation4 + $0x38] sm:$0xff]
      %v927 = vld [vmem:[#allocation4 + $0x40] sm:$0xff]
      %v928 = vld [vmem:[#allocation4 + $0x48] sm:$0xff]
      %v929 = vld [vmem:[#allocation4 + $0x50] sm:$0xff]
      %v930 = vld [vmem:[#allocation4 + $0x58] sm:$0xff]
      %v931 = vld [vmem:[#allocation4 + $0x60] sm:$0xff]
      %v932 = vld [vmem:[#allocation4 + $0x68] sm:$0xff]
      %v933 = vld [vmem:[#allocation4 + $0x70] sm:$0xff]
      %v934 = vld [vmem:[#allocation4 + $0x78] sm:$0xff]
      %v935 = vld [vmem:[#allocation4 + $0x80] sm:$0xff]
      %v936 = vld [vmem:[#allocation4 + $0x88] sm:$0xff]
      %v937 = vld [vmem:[#allocation4 + $0x90] sm:$0xff]
      %v938 = vld [vmem:[#allocation4 + $0x98] sm:$0xff]
      %v939 = vld [vmem:[#allocation4 + $0xa0] sm:$0xff]
      %v940 = vld [vmem:[#allocation4 + $0xa8] sm:$0xff]
      %v941 = vld [vmem:[#allocation4 + $0xb0] sm:$0xff]
      %v942 = vld [vmem:[#allocation4 + $0xb8] sm:$0xff]
      %v943 = vld [vmem:[#allocation4 + $0xc0] sm:$0xff]
      %v944 = vld [vmem:[#allocation4 + $0xc8] sm:$0xff]
      %v945 = vld [vmem:[#allocation4 + $0xd0] sm:$0xff]
      %v946 = vld [vmem:[#allocation4 + $0xd8] sm:$0xff]
      %v947 = vld [vmem:[#allocation4 + $0xe0] sm:$0xff]
      %v948 = vld [vmem:[#allocation4 + $0xe8] sm:$0xff]
      %v949 = vld [vmem:[#allocation4 + $0xf0] sm:$0xff]
      %v950 = vld [vmem:[#allocation4 + $0xf8] sm:$0xff]
      %v951 = vld [vmem:[#allocation4 + $0x100] sm:$0xff]
      %v952 = vld [vmem:[#allocation4 + $0x108] sm:$0xff]
      %v953 = vld [vmem:[#allocation4 + $0x110] sm:$0xff]
      %v954 = vld [vmem:[#allocation4 + $0x118] sm:$0xff]
      %v955 = vld [vmem:[#allocation4 + $0x120] sm:$0xff]
      %v956 = vld [vmem:[#allocation4 + $0x128] sm:$0xff]
      %v957 = vld [vmem:[#allocation4 + $0x130] sm:$0xff]
      %v958 = vld [vmem:[#allocation4 + $0x138] sm:$0xff]
      %v959 = vld [vmem:[#allocation4 + $0x140] sm:$0xff]
      %v960 = vld [vmem:[#allocation4 + $0x148] sm:$0xff]
      %v961 = vld [vmem:[#allocation4 + $0x150] sm:$0xff]
      %v962 = vld [vmem:[#allocation4 + $0x158] sm:$0xff]
      %v963 = vld [vmem:[#allocation4 + $0x160] sm:$0xff]
      %v964 = vld [vmem:[#allocation4 + $0x168] sm:$0xff]
      %v965 = vld [vmem:[#allocation4 + $0x170] sm:$0xff]
      %v966 = vld [vmem:[#allocation4 + $0x178] sm:$0xff]
      %v967 = vld [vmem:[#allocation4 + $0x180] sm:$0xff]
      %v968 = vld [vmem:[#allocation4 + $0x188] sm:$0xff]
      %v969 = vld [vmem:[#allocation4 + $0x190] sm:$0xff]
      %v970 = vld [vmem:[#allocation4 + $0x198] sm:$0xff]
      %v971 = vld [vmem:[#allocation4 + $0x1a0] sm:$0xff]
      %v972 = vld [vmem:[#allocation4 + $0x1a8] sm:$0xff]
      %v973 = vld [vmem:[#allocation4 + $0x1b0] sm:$0xff]
      %v974 = vld [vmem:[#allocation4 + $0x1b8] sm:$0xff]
      %v975 = vld [vmem:[#allocation4 + $0x1c0] sm:$0xff]
      %v976 = vld [vmem:[#allocation4 + $0x1c8] sm:$0xff]
      %v977 = vld [vmem:[#allocation4 + $0x1d0] sm:$0xff]
      %v978 = vld [vmem:[#allocation4 + $0x1d8] sm:$0xff]
      %v979 = vld [vmem:[#allocation4 + $0x1e0] sm:$0xff]
      %v980 = vld [vmem:[#allocation4 + $0x1e8] sm:$0xff]
      %v981 = vld [vmem:[#allocation4 + $0x1f0] sm:$0xff]
      %v982 = vld [vmem:[#allocation4 + $0x1f8] sm:$0xff]
      %v983 = vld [vmem:[#allocation4 + $0x200] sm:$0xff]
      %v984 = vld [vmem:[#allocation4 + $0x208] sm:$0xff]
      %v985 = vld [vmem:[#allocation4 + $0x210] sm:$0xff]
      %v986 = vld [vmem:[#allocation4 + $0x218] sm:$0xff]
      %v987 = vld [vmem:[#allocation4 + $0x220] sm:$0xff]
      %v988 = vld [vmem:[#allocation4 + $0x228] sm:$0xff]
      %v989 = vld [vmem:[#allocation4 + $0x230] sm:$0xff]
      %v990 = vld [vmem:[#allocation4 + $0x238] sm:$0xff]
      %v991 = vld [vmem:[#allocation4 + $0x240] sm:$0xff]
      %v992 = vld [vmem:[#allocation4 + $0x248] sm:$0xff]
      %v993 = vld [vmem:[#allocation4 + $0x250] sm:$0xff]
      %v994 = vld [vmem:[#allocation4 + $0x258] sm:$0xff]
      %v995 = vld [vmem:[#allocation4 + $0x260] sm:$0xff]
      %v996 = vld [vmem:[#allocation4 + $0x268] sm:$0xff]
      %v997 = vld [vmem:[#allocation4 + $0x270] sm:$0xff]
      %v998 = vld [vmem:[#allocation4 + $0x278] sm:$0xff]
      %v999 = vld [vmem:[#allocation4 + $0x280] sm:$0xff]
      %v1000 = vld [vmem:[#allocation4 + $0x288] sm:$0xff]
      %v1001 = vld [vmem:[#allocation4 + $0x290] sm:$0xff]
      %v1002 = vld [vmem:[#allocation4 + $0x298] sm:$0xff]
      %v1003 = vld [vmem:[#allocation4 + $0x2a0] sm:$0xff]
      %v1004 = vld [vmem:[#allocation4 + $0x2a8] sm:$0xff]
      %v1005 = vld [vmem:[#allocation4 + $0x2b0] sm:$0xff]
      %v1006 = vld [vmem:[#allocation4 + $0x2b8] sm:$0xff]
      %v1007 = vld [vmem:[#allocation4 + $0x2c0] sm:$0xff]
      %v1008 = vld [vmem:[#allocation4 + $0x2c8] sm:$0xff]
      %v1009 = vld [vmem:[#allocation4 + $0x2d0] sm:$0xff]
      %v1010 = vld [vmem:[#allocation4 + $0x2d8] sm:$0xff]
      %v1011 = vld [vmem:[#allocation4 + $0x2e0] sm:$0xff]
      %v1012 = vld [vmem:[#allocation4 + $0x2e8] sm:$0xff]
      %v1013 = vld [vmem:[#allocation4 + $0x2f0] sm:$0xff]
      %v1014 = vld [vmem:[#allocation4 + $0x2f8] sm:$0xff]
      %v1015 = vld [vmem:[#allocation4 + $0x300] sm:$0xff]
      %v1016 = vld [vmem:[#allocation4 + $0x308] sm:$0xff]
      %v1017 = vld [vmem:[#allocation4 + $0x310] sm:$0xff]
      %v1018 = vld [vmem:[#allocation4 + $0x318] sm:$0xff]
      %v1019 = vld [vmem:[#allocation4 + $0x320] sm:$0xff]
      %v1020 = vld [vmem:[#allocation4 + $0x328] sm:$0xff]
      %v1021 = vld [vmem:[#allocation4 + $0x330] sm:$0xff]
      %v1022 = vld [vmem:[#allocation4 + $0x338] sm:$0xff]
      %v1023 = vld [vmem:[#allocation4 + $0x340] sm:$0xff]
      %v1024 = vld [vmem:[#allocation4 + $0x348] sm:$0xff]
      %v1025 = vld [vmem:[#allocation4 + $0x350] sm:$0xff]
      %v1026 = vld [vmem:[#allocation4 + $0x358] sm:$0xff]
      %v1027 = vld [vmem:[#allocation4 + $0x360] sm:$0xff]
      %v1028 = vld [vmem:[#allocation4 + $0x368] sm:$0xff]
      %v1029 = vld [vmem:[#allocation4 + $0x370] sm:$0xff]
      %v1030 = vld [vmem:[#allocation4 + $0x378] sm:$0xff]
      %v1031 = vld [vmem:[#allocation4 + $0x380] sm:$0xff]
      %v1032 = vld [vmem:[#allocation4 + $0x388] sm:$0xff]
      %v1033 = vld [vmem:[#allocation4 + $0x390] sm:$0xff]
      %v1034 = vld [vmem:[#allocation4 + $0x398] sm:$0xff]
      %v1035 = vld [vmem:[#allocation4 + $0x3a0] sm:$0xff]
      %v1036 = vld [vmem:[#allocation4 + $0x3a8] sm:$0xff]
      %v1037 = vld [vmem:[#allocation4 + $0x3b0] sm:$0xff]
      %v1038 = vld [vmem:[#allocation4 + $0x3b8] sm:$0xff]
      %v1039 = vld [vmem:[#allocation4 + $0x3c0] sm:$0xff]
      %v1040 = vld [vmem:[#allocation4 + $0x3c8] sm:$0xff]
      %v1041 = vld [vmem:[#allocation4 + $0x3d0] sm:$0xff]
      %v1042 = vld [vmem:[#allocation4 + $0x3d8] sm:$0xff]
      %v1043 = vld [vmem:[#allocation4 + $0x3e0] sm:$0xff]
      %v1044 = vld [vmem:[#allocation4 + $0x3e8] sm:$0xff]
      %v1045 = vld [vmem:[#allocation4 + $0x3f0] sm:$0xff]
      %v1046 = vld [vmem:[#allocation4 + $0x3f8] sm:$0xff]
      %v1047 = vld [vmem:[%s8] sm:$0x3]
      %1048 = vst [vmem:[#allocation9] sm:$0xf] %v910
      %v1049 = vld [vmem:[#allocation9] sm:$0x1]
      %v1050 = vld [vmem:[#allocation9 + $0x1] sm:$0x1]
      %v1051 = vld [vmem:[#allocation9 + $0x2] sm:$0x1]
      %v1052 = vld [vmem:[#allocation9 + $0x3] sm:$0x1]
      %v1054 = vperm.slane %v1047, 0
      %v1055 = vperm.slane %v1047, 1
      %1058 = vmatpush.msra.mxu0 %v949
      %1059 = vmatpush.msra.mxu0 %v947
      %1060 = vmatpush.msra.mxu0 %v945
      %1061 = vmatpush.msra.mxu0 %v943
      %1062 = vmatpush.msra.mxu0 %v941
      %1063 = vmatpush.msra.mxu0 %v939
      %1064 = vmatpush.msra.mxu0 %v937
      %1065 = vmatpush.msra.mxu0 %v935
      %1066 = vmatpush.msra.mxu0 %v933
      %1067 = vmatpush.msra.mxu0 %v931
      %1068 = vmatpush.msra.mxu0 %v929
      %1069 = vmatpush.msra.mxu0 %v927
      %1070 = vmatpush.msra.mxu0 %v925
      %1071 = vmatpush.msra.mxu0 %v923
      %1072 = vmatpush.msra.mxu0 %v921
      %1073 = vmatpush.msra.mxu0 %v919
      %1074 = vmatmul.f32.gmra.mxu0 %v1049
      %v1075 = vpop.f32.mrf.mxu0
      %v1076 = vadd.f32 %v1054, %v1075
      %1077 = vdwg.mxu0
      %1078 = vmatpush.msra.mxu0 %v981
      %1079 = vmatpush.msra.mxu0 %v979
      %1080 = vmatpush.msra.mxu0 %v977
      %1081 = vmatpush.msra.mxu0 %v975
      %1082 = vmatpush.msra.mxu0 %v973
      %1083 = vmatpush.msra.mxu0 %v971
      %1084 = vmatpush.msra.mxu0 %v969
      %1085 = vmatpush.msra.mxu0 %v967
      %1086 = vmatpush.msra.mxu0 %v965
      %1087 = vmatpush.msra.mxu0 %v963
      %1088 = vmatpush.msra.mxu0 %v961
      %1089 = vmatpush.msra.mxu0 %v959
      %1090 = vmatpush.msra.mxu0 %v957
      %1091 = vmatpush.msra.mxu0 %v955
      %1092 = vmatpush.msra.mxu0 %v953
      %1093 = vmatpush.msra.mxu0 %v951
      %1094 = vmatmul.f32.gmra.mxu0 %v1050
      %v1095 = vpop.f32.mrf.mxu0
      %v1096 = vadd.f32 %v1076, %v1095
      %1097 = vdwg.mxu0
      %1098 = vmatpush.msra.mxu0 %v1013
      %1099 = vmatpush.msra.mxu0 %v1011
      %1100 = vmatpush.msra.mxu0 %v1009
      %1101 = vmatpush.msra.mxu0 %v1007
      %1102 = vmatpush.msra.mxu0 %v1005
      %1103 = vmatpush.msra.mxu0 %v1003
      %1104 = vmatpush.msra.mxu0 %v1001
      %1105 = vmatpush.msra.mxu0 %v999
      %1106 = vmatpush.msra.mxu0 %v997
      %1107 = vmatpush.msra.mxu0 %v995
      %1108 = vmatpush.msra.mxu0 %v993
      %1109 = vmatpush.msra.mxu0 %v991
      %1110 = vmatpush.msra.mxu0 %v989
      %1111 = vmatpush.msra.mxu0 %v987
      %1112 = vmatpush.msra.mxu0 %v985
      %1113 = vmatpush.msra.mxu0 %v983
      %1114 = vmatmul.f32.gmra.mxu0 %v1051
      %v1115 = vpop.f32.mrf.mxu0
      %v1116 = vadd.f32 %v1096, %v1115
      %1117 = vdwg.mxu0
      %1118 = vmatpush.msra.mxu0 %v1045
      %1119 = vmatpush.msra.mxu0 %v1043
      %1120 = vmatpush.msra.mxu0 %v1041
      %1121 = vmatpush.msra.mxu0 %v1039
      %1122 = vmatpush.msra.mxu0 %v1037
      %1123 = vmatpush.msra.mxu0 %v1035
      %1124 = vmatpush.msra.mxu0 %v1033
      %1125 = vmatpush.msra.mxu0 %v1031
      %1126 = vmatpush.msra.mxu0 %v1029
      %1127 = vmatpush.msra.mxu0 %v1027
      %1128 = vmatpush.msra.mxu0 %v1025
      %1129 = vmatpush.msra.mxu0 %v1023
      %1130 = vmatpush.msra.mxu0 %v1021
      %1131 = vmatpush.msra.mxu0 %v1019
      %1132 = vmatpush.msra.mxu0 %v1017
      %1133 = vmatpush.msra.mxu0 %v1015
      %1134 = vmatmul.f32.gmra.mxu0 %v1052
      %v1135 = vpop.f32.mrf.mxu0
      %v1136 = vadd.f32 %v1116, %v1135
      %1137 = vdwg.mxu0
      %1138 = vmatpush.msra.mxu0 %v950
      %1139 = vmatpush.msra.mxu0 %v948
      %1140 = vmatpush.msra.mxu0 %v946
      %1141 = vmatpush.msra.mxu0 %v944
      %1142 = vmatpush.msra.mxu0 %v942
      %1143 = vmatpush.msra.mxu0 %v940
      %1144 = vmatpush.msra.mxu0 %v938
      %1145 = vmatpush.msra.mxu0 %v936
      %1146 = vmatpush.msra.mxu0 %v934
      %1147 = vmatpush.msra.mxu0 %v932
      %1148 = vmatpush.msra.mxu0 %v930
      %1149 = vmatpush.msra.mxu0 %v928
      %1150 = vmatpush.msra.mxu0 %v926
      %1151 = vmatpush.msra.mxu0 %v924
      %1152 = vmatpush.msra.mxu0 %v922
      %1153 = vmatpush.msra.mxu0 %v920
      %1154 = vmatmul.f32.gmra.mxu0 %v1049
      %v1155 = vpop.f32.mrf.mxu0
      %v1156 = vadd.f32 %v1055, %v1155
      %1157 = vdwg.mxu0
      %1158 = vmatpush.msra.mxu0 %v982
      %1159 = vmatpush.msra.mxu0 %v980
      %1160 = vmatpush.msra.mxu0 %v978
      %1161 = vmatpush.msra.mxu0 %v976
      %1162 = vmatpush.msra.mxu0 %v974
      %1163 = vmatpush.msra.mxu0 %v972
      %1164 = vmatpush.msra.mxu0 %v970
      %1165 = vmatpush.msra.mxu0 %v968
      %1166 = vmatpush.msra.mxu0 %v966
      %1167 = vmatpush.msra.mxu0 %v964
      %1168 = vmatpush.msra.mxu0 %v962
      %1169 = vmatpush.msra.mxu0 %v960
      %1170 = vmatpush.msra.mxu0 %v958
      %1171 = vmatpush.msra.mxu0 %v956
      %1172 = vmatpush.msra.mxu0 %v954
      %1173 = vmatpush.msra.mxu0 %v952
      %1174 = vmatmul.f32.gmra.mxu0 %v1050
      %v1175 = vpop.f32.mrf.mxu0
      %v1176 = vadd.f32 %v1156, %v1175
      %1177 = vdwg.mxu0
      %1178 = vmatpush.msra.mxu0 %v1014
      %1179 = vmatpush.msra.mxu0 %v1012
      %1180 = vmatpush.msra.mxu0 %v1010
      %1181 = vmatpush.msra.mxu0 %v1008
      %1182 = vmatpush.msra.mxu0 %v1006
      %1183 = vmatpush.msra.mxu0 %v1004
      %1184 = vmatpush.msra.mxu0 %v1002
      %1185 = vmatpush.msra.mxu0 %v1000
      %1186 = vmatpush.msra.mxu0 %v998
      %1187 = vmatpush.msra.mxu0 %v996
      %1188 = vmatpush.msra.mxu0 %v994
      %1189 = vmatpush.msra.mxu0 %v992
      %1190 = vmatpush.msra.mxu0 %v990
      %1191 = vmatpush.msra.mxu0 %v988
      %1192 = vmatpush.msra.mxu0 %v986
      %1193 = vmatpush.msra.mxu0 %v984
      %1194 = vmatmul.f32.gmra.mxu0 %v1051
      %v1195 = vpop.f32.mrf.mxu0
      %v1196 = vadd.f32 %v1176, %v1195
      %1197 = vdwg.mxu0
      %1198 = vmatpush.msra.mxu0 %v1046
      %1199 = vmatpush.msra.mxu0 %v1044
      %1200 = vmatpush.msra.mxu0 %v1042
      %1201 = vmatpush.msra.mxu0 %v1040
      %1202 = vmatpush.msra.mxu0 %v1038
      %1203 = vmatpush.msra.mxu0 %v1036
      %1204 = vmatpush.msra.mxu0 %v1034
      %1205 = vmatpush.msra.mxu0 %v1032
      %1206 = vmatpush.msra.mxu0 %v1030
      %1207 = vmatpush.msra.mxu0 %v1028
      %1208 = vmatpush.msra.mxu0 %v1026
      %1209 = vmatpush.msra.mxu0 %v1024
      %1210 = vmatpush.msra.mxu0 %v1022
      %1211 = vmatpush.msra.mxu0 %v1020
      %1212 = vmatpush.msra.mxu0 %v1018
      %1213 = vmatpush.msra.mxu0 %v1016
      %1214 = vmatmul.f32.gmra.mxu0 %v1052
      %v1215 = vpop.f32.mrf.mxu0
      %v1216 = vadd.f32 %v1196, %v1215
      %1217 = vdwg.mxu0
      %vm1218 = vcmp.ge.f32.partialorder %v1136, 0.0
      %vm1219 = vcmp.ge.f32.partialorder %v1216, 0.0
      %v1220 = vmul.f32 %v1136, 0.2
      %v1221 = vmul.f32 %v1216, 0.2
      %v1222 = vsel %vm1218, %v1136, %v1220
      %v1223 = vsel %vm1219, %v1216, %v1221
      %v1226 = vrot.slane %v1223, 7
      %vm1227 = vcmask 1040384
      %v1228 = vsel %vm1227, %v1222, %v1226
      %v1230 = vlaneseq
      %vm1231 = vcmp.ge.s32.totalorder %v1230, 0
      %vm1232 = vcmp.lt.s32.totalorder %v1230, 256
      %vm1233 = vmand %vm1231, %vm1232
      %1234 = vst.msk [vmem:[%s252] sm:$0x3] %vm1233, %v1228
      %p1235 = scmp.lt.s32.totalorder %s20, 1
      %s1236 = scalar_select %p1235, %s20, 1
      %s1237 = smul.addr %s1236, 2
      %s1238 = scalar_lea.vmem %s9, %s1237
      // Predicated region
      $region103: #{two_layer_scale2_forward.1} parent=43 // pred_check
        %p1239 = pneg %p169
      $region104: #{two_layer_scale2_forward.1} parent=43 // pred_check_branch
        %1241 = sbr.rel (%p1239) target = $region106
      $region105: #{two_layer_scale2_forward.1} parent=43 // pred_region
        _
      $region106: #{two_layer_scale2_forward.1} parent=43 // pred_fallthru
        _
    $region44: #{two_layer_scale2_forward.1} parent=5 // pred_fallthru
      _
    %p1242 = scmp.le.s32.totalorder 2, %s15
    // Predicated region
    $region107: #{two_layer_scale2_forward.1} parent=5 // pred_check
      %p1243 = pneg %p1242
    $region108: #{two_layer_scale2_forward.1} parent=5 // pred_check_branch
      %1245 = sbr.rel (%p1243) target = $region110
    $region109: #{two_layer_scale2_forward.1} parent=5 // pred_region
      %s1246 = ssub.s32 %s15, 2
      // Predicated region
      $region111: #{two_layer_scale2_forward.1} parent=109 // pred_check
        %p1247 = pneg %p175
      $region112: #{two_layer_scale2_forward.1} parent=109 // pred_check_branch
        %1249 = sbr.rel (%p1247) target = $region114
      $region113: #{two_layer_scale2_forward.1} parent=109 // pred_region
        %p1250 = scmp.lt.s32.totalorder %s21, 1
        %s1251 = scalar_select %p1250, %s21, 1
        %s1252 = smul.addr %s1251, 2
        %s1253 = scalar_lea.vmem %s9, %s1252
      $region114: #{two_layer_scale2_forward.1} parent=109 // pred_fallthru
        _
    $region110: #{two_layer_scale2_forward.1} parent=5 // pred_fallthru
      _
  $region6: #{two_layer_scale2_forward.1} parent=0 // loop_footer
    %s19 = sadd.s32 1, %s15
  $region7: #{two_layer_scale2_forward.1} parent=0 // loop_footer_branch
    %14 = sbr.rel target = $region3
  $region8: #{two_layer_scale2_forward.1} parent=0 // loop_exit
    _
  %1254 = vsyncmov [#allocation5]
  %s1255 = vpop.sfrf %1254
  %p1256 = scmp.eq.s32.totalorder %s1255, 0
  %p1257 = pneg %p1256
  %1259 = shalt.err (%p1257)
  %s1260 = scalar_lea.sflag [#allocation5], 1
  %1261 = vsyncmov %s1260
  %s1262 = vpop.sfrf %1261
  %p1263 = scmp.eq.s32.totalorder %s1262, 0
  %p1264 = pneg %p1263
  %1266 = shalt.err (%p1264)
  %s1267 = scalar_lea.sflag [#allocation5], 2
  %1268 = vsyncmov %s1267
  %s1269 = vpop.sfrf %1268
  %p1270 = scmp.eq.s32.totalorder %s1269, 0
  %p1271 = pneg %p1270
  %1273 = shalt.err (%p1271)

</llo_original>
